<compile_context>
chip_gen: v7x
topology: tpu7x:2x2x1
jax: 0.10.0
libtpu: 0.0.40
codegen_flags: <defaults>
</compile_context>

<pallas_src>
import jax
import jax.numpy as jnp
from jax.experimental import pallas as pl
from jax.experimental.pallas import tpu as pltpu

BN_EPS = 1e-5
HIDDEN = 256
IN_CH = 1024
LANE = 128


def _round_up(x, m):
    return (x + m - 1) // m * m


def _padded_bytes(shape, itemsize):
    """VMEM bytes of one buffer: last dim padded to 128 lanes, 2nd-last to the sublane pack."""
    sublane = {4: 8, 2: 16, 1: 32}[itemsize]
    dims = list(shape)
    dims[-1] = _round_up(dims[-1], LANE)
    if len(dims) >= 2:
        dims[-2] = _round_up(dims[-2], sublane)
    n = 1
    for d in dims:
        n *= d
    return n * itemsize


def _vmem_budget_and_cap():
    """Per-generation VMEM budget (with headroom) and physical capacity."""
    cap = 64 << 20  # conservative fallback = v7x per-TensorCore VMEM
    try:
        cap = int(getattr(pltpu.get_tpu_info(), "vmem_capacity_bytes", cap))
    except Exception:
        pass
    cap = max(cap, 32 << 20)
    # ~48 MiB on v7x (64 MiB physical), 64 MiB on v5e/v6e (128 MiB physical).
    budget = min(cap * 3 // 4, 64 << 20)
    return budget, cap


def _pick_tiling(B, HW, ncp, budget):
    """Pick an 8-aligned batch tile using padded-byte VMEM accounting; pad B to a multiple."""
    # Resident weights/biases (constant index_map; pipeliner still double-buffers them).
    weight_bytes = 2 * (_padded_bytes((IN_CH, HIDDEN), 4) + _padded_bytes((1, HIDDEN), 4)
                        + _padded_bytes((HIDDEN, ncp), 4) + _padded_bytes((1, ncp), 4))
    r_hw_bf16 = _round_up(HW, 16)   # bf16 sublane packing
    r_hw_f32 = _round_up(HW, 8)
    per_b = (2 * r_hw_bf16 * IN_CH * 2        # double-buffered bf16 feature tile
             + r_hw_bf16 * IN_CH * 2          # in-kernel ReLU intermediate (bf16)
             + r_hw_f32 * IN_CH * 4           # in-kernel f32 upcast before the HW sum
             + 2 * (HIDDEN + ncp) * 4         # double-buffered f32 output rows
             + (IN_CH + HIDDEN) * 4)          # pooled / h intermediates
    avail = budget - weight_bytes - (2 << 20)           # slack for Mosaic internals
    tb_budget = max(8, (avail // per_b) // 8 * 8)

    b8 = _round_up(B, 8)
    g_min = 2 if b8 >= 16 else 1     # >=2 grid steps when batch allows (megacore + pipeline)
    g = max(g_min, pl.cdiv(b8, tb_budget))
    tb = min(tb_budget, _round_up(pl.cdiv(b8, g), 8))
    g = pl.cdiv(b8, tb)
    b_pad = g * tb
    vmem_bytes = weight_bytes + per_b * tb + (4 << 20)
    return int(tb), int(g), int(b_pad), int(vmem_bytes)


def _densnet_head_kernel(x_ref, w1_ref, b1_ref, w2_ref, b2_ref, logits_ref, out_ref):
    # x_ref: [TB, HW, 1024] bf16, channels-last (C on lanes, HW on sublanes).
    feat = jnp.maximum(x_ref[...], 0.0)                      # F.relu(features), bf16 on VPU
    # adaptive_avg_pool2d((1,1)) -> sum over HW in f32; the 1/HW factor is folded into w1.
    pooled = jnp.sum(feat.astype(jnp.float32), axis=1)       # [TB, 1024]

    # pre_classifier: Linear(1024,256) with eval-mode BatchNorm1d pre-folded, then ReLU.
    h = jnp.dot(pooled, w1_ref[...],
                preferred_element_type=jnp.float32) + b1_ref[...]
    h = jnp.maximum(h, 0.0)
    out_ref[...] = h                                         # second returned tensor

    # classifier: Linear(256, NC) (lane-padded to a multiple of 128).
    logits_ref[...] = jnp.dot(h, w2_ref[...],
                              preferred_element_type=jnp.float32) + b2_ref[...]


def densnet_head(features_nhwc, params, num_classes):
    """features_nhwc: [B, H, W, 1024] float32, channels-last view of the backbone output.

    The head's pooling is layout-agnostic, so we take the channels-last layout directly
    (an XLA-run backbone is NHWC-native; an NCHW tensor only needs a one-time transpose).
    """
    B, H, W, C = features_nhwc.shape
    assert C == IN_CH
    HW = H * W
    NC = num_classes
    NCP = _round_up(max(NC, 1), LANE)

    w1, b1, gamma, beta, rmean, rvar, w2, b2 = params

    # Fold eval-mode BatchNorm + 1/HW pooling factor into the first Linear.
    scale = (gamma * jax.lax.rsqrt(rvar + BN_EPS)).reshape(1, HIDDEN)   # [1, 256]
    w1f = (w1 * scale) / float(HW)                                      # [1024, 256]
    b1f = (b1.reshape(1, HIDDEN) - rmean.reshape(1, HIDDEN)) * scale \
          + beta.reshape(1, HIDDEN)                                     # [1, 256]

    # Lane-dense classifier weights.
    w2p = jnp.zeros((HIDDEN, NCP), jnp.float32).at[:, :NC].set(w2)
    b2p = jnp.zeros((1, NCP), jnp.float32).at[:, :NC].set(b2.reshape(1, NC))

    budget, cap = _vmem_budget_and_cap()
    TB, G, B_pad, vmem_bytes = _pick_tiling(B, HW, NCP, budget)
    # Generous check limit (actual usage stays well below), capped under physical VMEM.
    vmem_limit = int(min(max(vmem_bytes, 32 << 20), cap - (4 << 20)))

    # bf16 at the kernel boundary halves the dominant HBM read; accumulation stays f32.
    x = features_nhwc.reshape(B, HW, C).astype(jnp.bfloat16)
    if B_pad != B:
        x = jnp.pad(x, ((0, B_pad - B), (0, 0), (0, 0)))

    logits_p, out_p = pl.pallas_call(
        _densnet_head_kernel,
        grid=(G,),
        in_specs=[
            pl.BlockSpec((TB, HW, C), lambda i: (i, 0, 0)),   # streamed bf16 feature tiles
            pl.BlockSpec((IN_CH, HIDDEN), lambda i: (0, 0)),  # w1 (BN + 1/HW folded)
            pl.BlockSpec((1, HIDDEN), lambda i: (0, 0)),      # b1 (folded)
            pl.BlockSpec((HIDDEN, NCP), lambda i: (0, 0)),    # w2 (lane-padded)
            pl.BlockSpec((1, NCP), lambda i: (0, 0)),         # b2 (lane-padded)
        ],
        out_specs=(
            pl.BlockSpec((TB, NCP), lambda i: (i, 0)),
            pl.BlockSpec((TB, HIDDEN), lambda i: (i, 0)),
        ),
        out_shape=(
            jax.ShapeDtypeStruct((B_pad, NCP), jnp.float32),
            jax.ShapeDtypeStruct((B_pad, HIDDEN), jnp.float32),
        ),
        compiler_params=pltpu.CompilerParams(
            dimension_semantics=("parallel",),
            vmem_limit_bytes=vmem_limit),
    )(x, w1f, b1f, w2p, b2p)

    return logits_p[:B, :NC], out_p[:B]


def _reference(features_nhwc, params):
    """Pure-JAX reference of the module head (f32, high-precision matmuls)."""
    w1, b1, gamma, beta, rmean, rvar, w2, b2 = params
    hi = jax.lax.Precision.HIGHEST
    feat = jnp.maximum(features_nhwc, 0.0)
    pooled = jnp.mean(feat, axis=(1, 2))                      # adaptive_avg_pool2d((1,1))
    h = jnp.dot(pooled, w1, precision=hi) + b1
    h = (h - rmean) * jax.lax.rsqrt(rvar + BN_EPS) * gamma + beta
    h = jnp.maximum(h, 0.0)
    return jnp.dot(h, w2, precision=hi) + b2, h


if __name__ == "__main__":
    B, H, W, C = 2, 4, 4, 1024
    NUM_CLASSES = 10

    key = jax.random.PRNGKey(0)
    kx, k1, k2, k3, k4, k5, k6, k7, k8 = jax.random.split(key, 9)

    # "backbone output" feature map (stand-in for densenet121 features), channels-last.
    features = jax.random.normal(kx, (B, H, W, C), dtype=jnp.float32)

    # deterministic parameter init (shapes from the module __init__)
    w1 = jax.random.normal(k1, (1024, 256), dtype=jnp.float32) * 0.02
    b1 = jax.random.normal(k2, (1, 256), dtype=jnp.float32) * 0.01
    gamma = 1.0 + 0.1 * jax.random.normal(k3, (1, 256), dtype=jnp.float32)
    beta = 0.1 * jax.random.normal(k4, (1, 256), dtype=jnp.float32)
    rmean = 0.1 * jax.random.normal(k5, (1, 256), dtype=jnp.float32)
    rvar = jnp.abs(1.0 + 0.1 * jax.random.normal(k6, (1, 256), dtype=jnp.float32))
    w2 = jax.random.normal(k7, (256, NUM_CLASSES), dtype=jnp.float32) * 0.05
    b2 = jax.random.normal(k8, (1, NUM_CLASSES), dtype=jnp.float32) * 0.01

    params = (w1, b1, gamma, beta, rmean, rvar, w2, b2)

    logits, out = densnet_head(features, params, NUM_CLASSES)
    jax.block_until_ready((logits, out))

    # Compare against the reference fed with the same bf16-quantized features
    # (the kernel casts the feature map to bf16 at its boundary).
    feat_q = features.astype(jnp.bfloat16).astype(jnp.float32)
    ref_logits, ref_out = _reference(feat_q, params)

    assert logits.shape == (B, NUM_CLASSES) and out.shape == (B, 256)
    assert jnp.allclose(logits, ref_logits, atol=1e-2, rtol=1e-2)
    assert jnp.allclose(out, ref_out, atol=1e-2, rtol=1e-2)

    print("KERNEL_OK")
</pallas_src>

<mosaic_0001>
module attributes {stable_mosaic.version = 11 : i64} {
  func.func @_densnet_head_kernel(%arg0: i32, %arg1: memref<8x16x1024xbf16, #tpu.memory_space<vmem>>, %arg2: memref<1024x256xf32, #tpu.memory_space<vmem>>, %arg3: memref<1x256xf32, #tpu.memory_space<vmem>>, %arg4: memref<256x128xf32, #tpu.memory_space<vmem>>, %arg5: memref<1x128xf32, #tpu.memory_space<vmem>>, %arg6: memref<8x128xf32, #tpu.memory_space<vmem>>, %arg7: memref<8x256xf32, #tpu.memory_space<vmem>>) attributes {dimension_semantics = [#tpu.dimension_semantics<parallel>], iteration_bounds = array<i64: 1>, scalar_prefetch = 0 : i64, scratch_operands = 0 : i64, tpu.core_type = #tpu.core_type<tc>, window_params = [{transform_indices = @transform_0, window_bounds = array<i64: 8, 16, 1024>}, {pipeline_mode = #tpu.pipeline_mode<synchronous>, transform_indices = @transform_1, window_bounds = array<i64: 1024, 256>}, {pipeline_mode = #tpu.pipeline_mode<synchronous>, transform_indices = @transform_2, window_bounds = array<i64: 1, 256>}, {pipeline_mode = #tpu.pipeline_mode<synchronous>, transform_indices = @transform_3, window_bounds = array<i64: 256, 128>}, {pipeline_mode = #tpu.pipeline_mode<synchronous>, transform_indices = @transform_4, window_bounds = array<i64: 1, 128>}, {transform_indices = @transform_5, window_bounds = array<i64: 8, 128>}, {transform_indices = @transform_6, window_bounds = array<i64: 8, 256>}]} {
    %c0 = arith.constant 0 : index
    %c0_0 = arith.constant 0 : index
    %c0_1 = arith.constant 0 : index
    %0 = vector.load %arg1[%c0, %c0_0, %c0_1] : memref<8x16x1024xbf16, #tpu.memory_space<vmem>>, vector<8x16x1024xbf16>
    %cst = arith.constant 0.000000e+00 : bf16
    %1 = vector.broadcast %cst : bf16 to vector<8x16x1024xbf16>
    %2 = arith.maximumf %0, %1 : vector<8x16x1024xbf16>
    %3 = arith.extf %2 : vector<8x16x1024xbf16> to vector<8x16x1024xf32>
    %cst_2 = arith.constant dense<0.000000e+00> : vector<8x1024xf32>
    %4 = vector.multi_reduction <add>, %3, %cst_2 [1] : vector<8x16x1024xf32> to vector<8x1024xf32>
    %c0_3 = arith.constant 0 : index
    %c0_4 = arith.constant 0 : index
    %5 = vector.load %arg2[%c0_3, %c0_4] : memref<1024x256xf32, #tpu.memory_space<vmem>>, vector<1024x256xf32>
    %cst_5 = arith.constant dense<0.000000e+00> : vector<8x256xf32>
    %6 = tpu.matmul %4, %5, %cst_5 {dimension_numbers = #tpu.dot_dimension_numbers<[1], [0], [0], [1], [0, 0, 1, 1], [], []>} : vector<8x1024xf32>, vector<1024x256xf32>, vector<8x256xf32> -> vector<8x256xf32>
    %c0_6 = arith.constant 0 : index
    %c0_7 = arith.constant 0 : index
    %7 = vector.load %arg3[%c0_6, %c0_7] : memref<1x256xf32, #tpu.memory_space<vmem>>, vector<1x256xf32>
    %8 = vector.broadcast %7 : vector<1x256xf32> to vector<8x256xf32>
    %9 = arith.addf %6, %8 : vector<8x256xf32>
    %cst_8 = arith.constant 0.000000e+00 : f32
    %10 = vector.broadcast %cst_8 : f32 to vector<8x256xf32>
    %11 = arith.maximumf %9, %10 : vector<8x256xf32>
    %c0_9 = arith.constant 0 : index
    %c0_10 = arith.constant 0 : index
    %12 = vector.load %arg7[%c0_9, %c0_10] : memref<8x256xf32, #tpu.memory_space<vmem>>, vector<8x256xf32>
    tpu.vector_store %arg7[%c0_9, %c0_10], %11 {strides = array<i32>} : memref<8x256xf32, #tpu.memory_space<vmem>>, vector<8x256xf32>,
    %c0_11 = arith.constant 0 : index
    %c0_12 = arith.constant 0 : index
    %13 = vector.load %arg4[%c0_11, %c0_12] : memref<256x128xf32, #tpu.memory_space<vmem>>, vector<256x128xf32>
    %cst_13 = arith.constant dense<0.000000e+00> : vector<8x128xf32>
    %14 = tpu.matmul %11, %13, %cst_13 {dimension_numbers = #tpu.dot_dimension_numbers<[1], [0], [0], [1], [0, 0, 1, 1], [], []>} : vector<8x256xf32>, vector<256x128xf32>, vector<8x128xf32> -> vector<8x128xf32>
    %c0_14 = arith.constant 0 : index
    %c0_15 = arith.constant 0 : index
    %15 = vector.load %arg5[%c0_14, %c0_15] : memref<1x128xf32, #tpu.memory_space<vmem>>, vector<1x128xf32>
    %16 = vector.broadcast %15 : vector<1x128xf32> to vector<8x128xf32>
    %17 = arith.addf %14, %16 : vector<8x128xf32>
    %c0_16 = arith.constant 0 : index
    %c0_17 = arith.constant 0 : index
    %18 = vector.load %arg6[%c0_16, %c0_17] : memref<8x128xf32, #tpu.memory_space<vmem>>, vector<8x128xf32>
    tpu.vector_store %arg6[%c0_16, %c0_17], %17 {strides = array<i32>} : memref<8x128xf32, #tpu.memory_space<vmem>>, vector<8x128xf32>,
    return
  }
  func.func @transform_0(%arg0: i32) -> (i32, i32, i32) {
    %c0_i32 = arith.constant 0 : i32
    %c0_i32_0 = arith.constant 0 : i32
    %c0_i32_1 = arith.constant 0 : i32
    return %arg0, %c0_i32, %c0_i32_0 : i32, i32, i32
  }
  func.func @transform_1(%arg0: i32) -> (i32, i32) {
    %c0_i32 = arith.constant 0 : i32
    %c0_i32_0 = arith.constant 0 : i32
    %c0_i32_1 = arith.constant 0 : i32
    return %c0_i32, %c0_i32_0 : i32, i32
  }
  func.func @transform_2(%arg0: i32) -> (i32, i32) {
    %c0_i32 = arith.constant 0 : i32
    %c0_i32_0 = arith.constant 0 : i32
    %c0_i32_1 = arith.constant 0 : i32
    return %c0_i32, %c0_i32_0 : i32, i32
  }
  func.func @transform_3(%arg0: i32) -> (i32, i32) {
    %c0_i32 = arith.constant 0 : i32
    %c0_i32_0 = arith.constant 0 : i32
    %c0_i32_1 = arith.constant 0 : i32
    return %c0_i32, %c0_i32_0 : i32, i32
  }
  func.func @transform_4(%arg0: i32) -> (i32, i32) {
    %c0_i32 = arith.constant 0 : i32
    %c0_i32_0 = arith.constant 0 : i32
    %c0_i32_1 = arith.constant 0 : i32
    return %c0_i32, %c0_i32_0 : i32, i32
  }
  func.func @transform_5(%arg0: i32) -> (i32, i32) {
    %c0_i32 = arith.constant 0 : i32
    %c0_i32_0 = arith.constant 0 : i32
    return %arg0, %c0_i32 : i32, i32
  }
  func.func @transform_6(%arg0: i32) -> (i32, i32) {
    %c0_i32 = arith.constant 0 : i32
    %c0_i32_0 = arith.constant 0 : i32
    return %arg0, %c0_i32 : i32, i32
  }
}

</mosaic_0001>

<llo_original>
// kernel: tpu_custom_call.1
$region0: #{tpu_custom_call.1}
  #allocation0 [shape = 'u32[]', space=smem, size = 0x4, offset = 0x4, fixed_abs, tag = 'smem constant byte address 0x4 - core index']
  #allocation1 [shape = 'u32[144,128]{1,0:T(1,128)}', space=vmem, size = 0x12000, scoped, tag = 'internal scratch']
  %s0 = inlined_call_operand.hbm [shape: bf16[8,16,1024], index: 0, kind: input, shape index: {}]
  %s1 = inlined_call_operand.hbm [shape: f32[1024,256], index: 1, kind: input, shape index: {}]
  %s2 = inlined_call_operand.vmem [shape: f32[1,256], index: 2, kind: input, shape index: {}]
  %s3 = inlined_call_operand.hbm [shape: f32[256,128], index: 3, kind: input, shape index: {}]
  %s4 = inlined_call_operand.vmem [shape: f32[1,128], index: 4, kind: input, shape index: {}]
  %s5 = inlined_call_operand.hbm [shape: f32[8,128], index: 5, kind: output, shape index: {0}]
  %s6 = inlined_call_operand.hbm [shape: f32[8,256], index: 6, kind: output, shape index: {1}]
  %7 = xla_tuple %s5, %s6
  %s8 = sld [smem:[#allocation0]]
  $region50: #{tpu_custom_call.1} parent=0
    _
  %s10 = ssub.s32 1, %s8
  %s11 = scalar_select 0, %s10, %s8
  $region1: #{tpu_custom_call.1} parent=0
    #allocation2 [shape = 'u8[262144]{0}', space=vmem, size = 0x40000, scoped, tag = 'input window, operand 0, single buffered']
    #allocation3 [shape = 's32[1]{0}', space=sflag, size = 0x4, scoped, tag = 'scoped memory for tpu_custom_call.1']
    #allocation4 [shape = 's32[1]{0}', space=sflag, size = 0x4, scoped, tag = 'scoped memory for tpu_custom_call.1']
    #allocation5 [shape = 'u8[1048576]{0}', space=vmem, size = 0x100000, scoped, tag = 'input window, operand 1, single buffered']
    #allocation6 [shape = 's32[1]{0}', space=sflag, size = 0x4, scoped, tag = 'scoped memory for tpu_custom_call.1']
    #allocation7 [shape = 'u8[131072]{0}', space=vmem, size = 0x20000, scoped, tag = 'input window, operand 3, single buffered']
    #allocation8 [shape = 'u8[4096]{0}', space=vmem, size = 0x1000, scoped, tag = 'output window, operand 0, single buffered']
    #allocation9 [shape = 'u8[8192]{0}', space=vmem, size = 0x2000, scoped, tag = 'output window, operand 1, single buffered']
    #allocation10 [shape = 's32[1]{0}', space=sflag, size = 0x4, scoped, tag = 'scoped memory for tpu_custom_call.1']
    %12 = vsyncpa [#allocation3], 0
    %13 = vsyncpa [#allocation6], 0
    %14 = vsyncpa [#allocation4], 0
    %15 = vsyncpa [#allocation10], 0
    // Predicated region
    $region2: #{tpu_custom_call.1} parent=1 // pred_check
      _
    $region3: #{tpu_custom_call.1} parent=1 // pred_check_branch
      %17 = sbr.rel (0) target = $region5
    $region4: #{tpu_custom_call.1} parent=1 // pred_region
      %s19 = ssub.s32 8192, 8192
      %20 = vsyncadd [#allocation3], %s19
      %s21 = sshll.u32 [#allocation2], 4
      %s22 = int_to_ptr.vmem [resolvable:$true] %s21
      %27 = dma.hbm_to_vmem [thread:$0]  %s0, 8192, %s22, [#allocation3], 512, 512, 32
    $region5: #{tpu_custom_call.1} parent=1 // pred_fallthru
      _
    // Predicated region
    $region6: #{tpu_custom_call.1} parent=1 // pred_check
      _
    $region7: #{tpu_custom_call.1} parent=1 // pred_check_branch
      %29 = sbr.rel (0) target = $region9
    $region8: #{tpu_custom_call.1} parent=1 // pred_region
      %s31 = ssub.s32 32768, 32768
      %32 = vsyncadd [#allocation6], %s31
      %s33 = sshll.u32 [#allocation5], 4
      %s34 = int_to_ptr.vmem [resolvable:$true] %s33
      %39 = dma.hbm_to_vmem [thread:$0]  %s1, 32768, %s34, [#allocation6], 256, 256, 16
    $region9: #{tpu_custom_call.1} parent=1 // pred_fallthru
      _
    // Predicated region
    $region10: #{tpu_custom_call.1} parent=1 // pred_check
      _
    $region11: #{tpu_custom_call.1} parent=1 // pred_check_branch
      %41 = sbr.rel (0) target = $region13
    $region12: #{tpu_custom_call.1} parent=1 // pred_region
      _
    $region13: #{tpu_custom_call.1} parent=1 // pred_fallthru
      _
    // Predicated region
    $region14: #{tpu_custom_call.1} parent=1 // pred_check
      _
    $region15: #{tpu_custom_call.1} parent=1 // pred_check_branch
      %43 = sbr.rel (0) target = $region17
    $region16: #{tpu_custom_call.1} parent=1 // pred_region
      %s45 = ssub.s32 4096, 4096
      %46 = vsyncadd [#allocation6], %s45
      %s47 = sshll.u32 [#allocation7], 4
      %s48 = int_to_ptr.vmem [resolvable:$true] %s47
      %53 = dma.hbm_to_vmem [thread:$0]  %s3, 4096, %s48, [#allocation6], 128, 128, 8
    $region17: #{tpu_custom_call.1} parent=1 // pred_fallthru
      _
    // Predicated region
    $region18: #{tpu_custom_call.1} parent=1 // pred_check
      _
    $region19: #{tpu_custom_call.1} parent=1 // pred_check_branch
      %55 = sbr.rel (0) target = $region21
    $region20: #{tpu_custom_call.1} parent=1 // pred_region
      _
    $region21: #{tpu_custom_call.1} parent=1 // pred_fallthru
      _
    // Predicated region
    $region22: #{tpu_custom_call.1} parent=1 // pred_check
      _
    $region23: #{tpu_custom_call.1} parent=1 // pred_check_branch
      %57 = sbr.rel (0) target = $region25
    $region24: #{tpu_custom_call.1} parent=1 // pred_region
      %58 = dma.done [#allocation3], 8192
    $region25: #{tpu_custom_call.1} parent=1 // pred_fallthru
      _
    // Predicated region
    $region26: #{tpu_custom_call.1} parent=1 // pred_check
      _
    $region27: #{tpu_custom_call.1} parent=1 // pred_check_branch
      %60 = sbr.rel (0) target = $region29
    $region28: #{tpu_custom_call.1} parent=1 // pred_region
      %61 = dma.done [#allocation6], 32768
    $region29: #{tpu_custom_call.1} parent=1 // pred_fallthru
      _
    // Predicated region
    $region30: #{tpu_custom_call.1} parent=1 // pred_check
      _
    $region31: #{tpu_custom_call.1} parent=1 // pred_check_branch
      %63 = sbr.rel (0) target = $region33
    $region32: #{tpu_custom_call.1} parent=1 // pred_region
      %64 = dma.done [#allocation6], 4096
    $region33: #{tpu_custom_call.1} parent=1 // pred_fallthru
      _
    %v66 = vld [vmem:[#allocation2] sm:$0xff]
    %v67 = vld [vmem:[#allocation2 + $0x8] sm:$0xff]
    %v68 = vld [vmem:[#allocation2 + $0x10] sm:$0xff]
    %v69 = vld [vmem:[#allocation2 + $0x18] sm:$0xff]
    %v70 = vld [vmem:[#allocation2 + $0x20] sm:$0xff]
    %v71 = vld [vmem:[#allocation2 + $0x28] sm:$0xff]
    %v72 = vld [vmem:[#allocation2 + $0x30] sm:$0xff]
    %v73 = vld [vmem:[#allocation2 + $0x38] sm:$0xff]
    %v74 = vld [vmem:[#allocation2 + $0x40] sm:$0xff]
    %v75 = vld [vmem:[#allocation2 + $0x48] sm:$0xff]
    %v76 = vld [vmem:[#allocation2 + $0x50] sm:$0xff]
    %v77 = vld [vmem:[#allocation2 + $0x58] sm:$0xff]
    %v78 = vld [vmem:[#allocation2 + $0x60] sm:$0xff]
    %v79 = vld [vmem:[#allocation2 + $0x68] sm:$0xff]
    %v80 = vld [vmem:[#allocation2 + $0x70] sm:$0xff]
    %v81 = vld [vmem:[#allocation2 + $0x78] sm:$0xff]
    %v82 = vld [vmem:[#allocation2 + $0x80] sm:$0xff]
    %v83 = vld [vmem:[#allocation2 + $0x88] sm:$0xff]
    %v84 = vld [vmem:[#allocation2 + $0x90] sm:$0xff]
    %v85 = vld [vmem:[#allocation2 + $0x98] sm:$0xff]
    %v86 = vld [vmem:[#allocation2 + $0xa0] sm:$0xff]
    %v87 = vld [vmem:[#allocation2 + $0xa8] sm:$0xff]
    %v88 = vld [vmem:[#allocation2 + $0xb0] sm:$0xff]
    %v89 = vld [vmem:[#allocation2 + $0xb8] sm:$0xff]
    %v90 = vld [vmem:[#allocation2 + $0xc0] sm:$0xff]
    %v91 = vld [vmem:[#allocation2 + $0xc8] sm:$0xff]
    %v92 = vld [vmem:[#allocation2 + $0xd0] sm:$0xff]
    %v93 = vld [vmem:[#allocation2 + $0xd8] sm:$0xff]
    %v94 = vld [vmem:[#allocation2 + $0xe0] sm:$0xff]
    %v95 = vld [vmem:[#allocation2 + $0xe8] sm:$0xff]
    %v96 = vld [vmem:[#allocation2 + $0xf0] sm:$0xff]
    %v97 = vld [vmem:[#allocation2 + $0xf8] sm:$0xff]
    %v98 = vld [vmem:[#allocation2 + $0x100] sm:$0xff]
    %v99 = vld [vmem:[#allocation2 + $0x108] sm:$0xff]
    %v100 = vld [vmem:[#allocation2 + $0x110] sm:$0xff]
    %v101 = vld [vmem:[#allocation2 + $0x118] sm:$0xff]
    %v102 = vld [vmem:[#allocation2 + $0x120] sm:$0xff]
    %v103 = vld [vmem:[#allocation2 + $0x128] sm:$0xff]
    %v104 = vld [vmem:[#allocation2 + $0x130] sm:$0xff]
    %v105 = vld [vmem:[#allocation2 + $0x138] sm:$0xff]
    %v106 = vld [vmem:[#allocation2 + $0x140] sm:$0xff]
    %v107 = vld [vmem:[#allocation2 + $0x148] sm:$0xff]
    %v108 = vld [vmem:[#allocation2 + $0x150] sm:$0xff]
    %v109 = vld [vmem:[#allocation2 + $0x158] sm:$0xff]
    %v110 = vld [vmem:[#allocation2 + $0x160] sm:$0xff]
    %v111 = vld [vmem:[#allocation2 + $0x168] sm:$0xff]
    %v112 = vld [vmem:[#allocation2 + $0x170] sm:$0xff]
    %v113 = vld [vmem:[#allocation2 + $0x178] sm:$0xff]
    %v114 = vld [vmem:[#allocation2 + $0x180] sm:$0xff]
    %v115 = vld [vmem:[#allocation2 + $0x188] sm:$0xff]
    %v116 = vld [vmem:[#allocation2 + $0x190] sm:$0xff]
    %v117 = vld [vmem:[#allocation2 + $0x198] sm:$0xff]
    %v118 = vld [vmem:[#allocation2 + $0x1a0] sm:$0xff]
    %v119 = vld [vmem:[#allocation2 + $0x1a8] sm:$0xff]
    %v120 = vld [vmem:[#allocation2 + $0x1b0] sm:$0xff]
    %v121 = vld [vmem:[#allocation2 + $0x1b8] sm:$0xff]
    %v122 = vld [vmem:[#allocation2 + $0x1c0] sm:$0xff]
    %v123 = vld [vmem:[#allocation2 + $0x1c8] sm:$0xff]
    %v124 = vld [vmem:[#allocation2 + $0x1d0] sm:$0xff]
    %v125 = vld [vmem:[#allocation2 + $0x1d8] sm:$0xff]
    %v126 = vld [vmem:[#allocation2 + $0x1e0] sm:$0xff]
    %v127 = vld [vmem:[#allocation2 + $0x1e8] sm:$0xff]
    %v128 = vld [vmem:[#allocation2 + $0x1f0] sm:$0xff]
    %v129 = vld [vmem:[#allocation2 + $0x1f8] sm:$0xff]
    %v130 = vmax.bf16 %v66, 0
    %v131 = vmax.bf16 %v67, 0
    %v132 = vmax.bf16 %v68, 0
    %v133 = vmax.bf16 %v69, 0
    %v134 = vmax.bf16 %v70, 0
    %v135 = vmax.bf16 %v71, 0
    %v136 = vmax.bf16 %v72, 0
    %v137 = vmax.bf16 %v73, 0
    %v138 = vmax.bf16 %v74, 0
    %v139 = vmax.bf16 %v75, 0
    %v140 = vmax.bf16 %v76, 0
    %v141 = vmax.bf16 %v77, 0
    %v142 = vmax.bf16 %v78, 0
    %v143 = vmax.bf16 %v79, 0
    %v144 = vmax.bf16 %v80, 0
    %v145 = vmax.bf16 %v81, 0
    %v146 = vmax.bf16 %v82, 0
    %v147 = vmax.bf16 %v83, 0
    %v148 = vmax.bf16 %v84, 0
    %v149 = vmax.bf16 %v85, 0
    %v150 = vmax.bf16 %v86, 0
    %v151 = vmax.bf16 %v87, 0
    %v152 = vmax.bf16 %v88, 0
    %v153 = vmax.bf16 %v89, 0
    %v154 = vmax.bf16 %v90, 0
    %v155 = vmax.bf16 %v91, 0
    %v156 = vmax.bf16 %v92, 0
    %v157 = vmax.bf16 %v93, 0
    %v158 = vmax.bf16 %v94, 0
    %v159 = vmax.bf16 %v95, 0
    %v160 = vmax.bf16 %v96, 0
    %v161 = vmax.bf16 %v97, 0
    %v162 = vmax.bf16 %v98, 0
    %v163 = vmax.bf16 %v99, 0
    %v164 = vmax.bf16 %v100, 0
    %v165 = vmax.bf16 %v101, 0
    %v166 = vmax.bf16 %v102, 0
    %v167 = vmax.bf16 %v103, 0
    %v168 = vmax.bf16 %v104, 0
    %v169 = vmax.bf16 %v105, 0
    %v170 = vmax.bf16 %v106, 0
    %v171 = vmax.bf16 %v107, 0
    %v172 = vmax.bf16 %v108, 0
    %v173 = vmax.bf16 %v109, 0
    %v174 = vmax.bf16 %v110, 0
    %v175 = vmax.bf16 %v111, 0
    %v176 = vmax.bf16 %v112, 0
    %v177 = vmax.bf16 %v113, 0
    %v178 = vmax.bf16 %v114, 0
    %v179 = vmax.bf16 %v115, 0
    %v180 = vmax.bf16 %v116, 0
    %v181 = vmax.bf16 %v117, 0
    %v182 = vmax.bf16 %v118, 0
    %v183 = vmax.bf16 %v119, 0
    %v184 = vmax.bf16 %v120, 0
    %v185 = vmax.bf16 %v121, 0
    %v186 = vmax.bf16 %v122, 0
    %v187 = vmax.bf16 %v123, 0
    %v188 = vmax.bf16 %v124, 0
    %v189 = vmax.bf16 %v125, 0
    %v190 = vmax.bf16 %v126, 0
    %v191 = vmax.bf16 %v127, 0
    %v192 = vmax.bf16 %v128, 0
    %v193 = vmax.bf16 %v129, 0
    %v194 = vunpack.c.l.bf16 %v130
    %v195 = vunpack.c.h.bf16 %v130
    %v196 = vunpack.c.l.bf16 %v131
    %v197 = vunpack.c.h.bf16 %v131
    %v198 = vunpack.c.l.bf16 %v132
    %v199 = vunpack.c.h.bf16 %v132
    %v200 = vunpack.c.l.bf16 %v133
    %v201 = vunpack.c.h.bf16 %v133
    %v202 = vunpack.c.l.bf16 %v134
    %v203 = vunpack.c.h.bf16 %v134
    %v204 = vunpack.c.l.bf16 %v135
    %v205 = vunpack.c.h.bf16 %v135
    %v206 = vunpack.c.l.bf16 %v136
    %v207 = vunpack.c.h.bf16 %v136
    %v208 = vunpack.c.l.bf16 %v137
    %v209 = vunpack.c.h.bf16 %v137
    %v210 = vunpack.c.l.bf16 %v138
    %v211 = vunpack.c.h.bf16 %v138
    %v212 = vunpack.c.l.bf16 %v139
    %v213 = vunpack.c.h.bf16 %v139
    %v214 = vunpack.c.l.bf16 %v140
    %v215 = vunpack.c.h.bf16 %v140
    %v216 = vunpack.c.l.bf16 %v141
    %v217 = vunpack.c.h.bf16 %v141
    %v218 = vunpack.c.l.bf16 %v142
    %v219 = vunpack.c.h.bf16 %v142
    %v220 = vunpack.c.l.bf16 %v143
    %v221 = vunpack.c.h.bf16 %v143
    %v222 = vunpack.c.l.bf16 %v144
    %v223 = vunpack.c.h.bf16 %v144
    %v224 = vunpack.c.l.bf16 %v145
    %v225 = vunpack.c.h.bf16 %v145
    %v226 = vunpack.c.l.bf16 %v146
    %v227 = vunpack.c.h.bf16 %v146
    %v228 = vunpack.c.l.bf16 %v147
    %v229 = vunpack.c.h.bf16 %v147
    %v230 = vunpack.c.l.bf16 %v148
    %v231 = vunpack.c.h.bf16 %v148
    %v232 = vunpack.c.l.bf16 %v149
    %v233 = vunpack.c.h.bf16 %v149
    %v234 = vunpack.c.l.bf16 %v150
    %v235 = vunpack.c.h.bf16 %v150
    %v236 = vunpack.c.l.bf16 %v151
    %v237 = vunpack.c.h.bf16 %v151
    %v238 = vunpack.c.l.bf16 %v152
    %v239 = vunpack.c.h.bf16 %v152
    %v240 = vunpack.c.l.bf16 %v153
    %v241 = vunpack.c.h.bf16 %v153
    %v242 = vunpack.c.l.bf16 %v154
    %v243 = vunpack.c.h.bf16 %v154
    %v244 = vunpack.c.l.bf16 %v155
    %v245 = vunpack.c.h.bf16 %v155
    %v246 = vunpack.c.l.bf16 %v156
    %v247 = vunpack.c.h.bf16 %v156
    %v248 = vunpack.c.l.bf16 %v157
    %v249 = vunpack.c.h.bf16 %v157
    %v250 = vunpack.c.l.bf16 %v158
    %v251 = vunpack.c.h.bf16 %v158
    %v252 = vunpack.c.l.bf16 %v159
    %v253 = vunpack.c.h.bf16 %v159
    %v254 = vunpack.c.l.bf16 %v160
    %v255 = vunpack.c.h.bf16 %v160
    %v256 = vunpack.c.l.bf16 %v161
    %v257 = vunpack.c.h.bf16 %v161
    %v258 = vunpack.c.l.bf16 %v162
    %v259 = vunpack.c.h.bf16 %v162
    %v260 = vunpack.c.l.bf16 %v163
    %v261 = vunpack.c.h.bf16 %v163
    %v262 = vunpack.c.l.bf16 %v164
    %v263 = vunpack.c.h.bf16 %v164
    %v264 = vunpack.c.l.bf16 %v165
    %v265 = vunpack.c.h.bf16 %v165
    %v266 = vunpack.c.l.bf16 %v166
    %v267 = vunpack.c.h.bf16 %v166
    %v268 = vunpack.c.l.bf16 %v167
    %v269 = vunpack.c.h.bf16 %v167
    %v270 = vunpack.c.l.bf16 %v168
    %v271 = vunpack.c.h.bf16 %v168
    %v272 = vunpack.c.l.bf16 %v169
    %v273 = vunpack.c.h.bf16 %v169
    %v274 = vunpack.c.l.bf16 %v170
    %v275 = vunpack.c.h.bf16 %v170
    %v276 = vunpack.c.l.bf16 %v171
    %v277 = vunpack.c.h.bf16 %v171
    %v278 = vunpack.c.l.bf16 %v172
    %v279 = vunpack.c.h.bf16 %v172
    %v280 = vunpack.c.l.bf16 %v173
    %v281 = vunpack.c.h.bf16 %v173
    %v282 = vunpack.c.l.bf16 %v174
    %v283 = vunpack.c.h.bf16 %v174
    %v284 = vunpack.c.l.bf16 %v175
    %v285 = vunpack.c.h.bf16 %v175
    %v286 = vunpack.c.l.bf16 %v176
    %v287 = vunpack.c.h.bf16 %v176
    %v288 = vunpack.c.l.bf16 %v177
    %v289 = vunpack.c.h.bf16 %v177
    %v290 = vunpack.c.l.bf16 %v178
    %v291 = vunpack.c.h.bf16 %v178
    %v292 = vunpack.c.l.bf16 %v179
    %v293 = vunpack.c.h.bf16 %v179
    %v294 = vunpack.c.l.bf16 %v180
    %v295 = vunpack.c.h.bf16 %v180
    %v296 = vunpack.c.l.bf16 %v181
    %v297 = vunpack.c.h.bf16 %v181
    %v298 = vunpack.c.l.bf16 %v182
    %v299 = vunpack.c.h.bf16 %v182
    %v300 = vunpack.c.l.bf16 %v183
    %v301 = vunpack.c.h.bf16 %v183
    %v302 = vunpack.c.l.bf16 %v184
    %v303 = vunpack.c.h.bf16 %v184
    %v304 = vunpack.c.l.bf16 %v185
    %v305 = vunpack.c.h.bf16 %v185
    %v306 = vunpack.c.l.bf16 %v186
    %v307 = vunpack.c.h.bf16 %v186
    %v308 = vunpack.c.l.bf16 %v187
    %v309 = vunpack.c.h.bf16 %v187
    %v310 = vunpack.c.l.bf16 %v188
    %v311 = vunpack.c.h.bf16 %v188
    %v312 = vunpack.c.l.bf16 %v189
    %v313 = vunpack.c.h.bf16 %v189
    %v314 = vunpack.c.l.bf16 %v190
    %v315 = vunpack.c.h.bf16 %v190
    %v316 = vunpack.c.l.bf16 %v191
    %v317 = vunpack.c.h.bf16 %v191
    %v318 = vunpack.c.l.bf16 %v192
    %v319 = vunpack.c.h.bf16 %v192
    %v320 = vunpack.c.l.bf16 %v193
    %v321 = vunpack.c.h.bf16 %v193
    %v322 = vadd.f32 %v194, %v202
    %v323 = vrot.slane %v322, 4
    %v324 = vadd.f32 %v322, %v323
    %v325 = vrot.slane %v324, 2
    %v326 = vadd.f32 %v324, %v325
    %v327 = vrot.slane %v326, 1
    %v328 = vadd.f32 %v326, %v327
    %v329 = vadd.f32 %v195, %v203
    %v330 = vrot.slane %v329, 4
    %v331 = vadd.f32 %v329, %v330
    %v332 = vrot.slane %v331, 2
    %v333 = vadd.f32 %v331, %v332
    %v334 = vrot.slane %v333, 1
    %v335 = vadd.f32 %v333, %v334
    %v336 = vadd.f32 %v196, %v204
    %v337 = vrot.slane %v336, 4
    %v338 = vadd.f32 %v336, %v337
    %v339 = vrot.slane %v338, 2
    %v340 = vadd.f32 %v338, %v339
    %v341 = vrot.slane %v340, 1
    %v342 = vadd.f32 %v340, %v341
    %v343 = vadd.f32 %v197, %v205
    %v344 = vrot.slane %v343, 4
    %v345 = vadd.f32 %v343, %v344
    %v346 = vrot.slane %v345, 2
    %v347 = vadd.f32 %v345, %v346
    %v348 = vrot.slane %v347, 1
    %v349 = vadd.f32 %v347, %v348
    %v350 = vadd.f32 %v198, %v206
    %v351 = vrot.slane %v350, 4
    %v352 = vadd.f32 %v350, %v351
    %v353 = vrot.slane %v352, 2
    %v354 = vadd.f32 %v352, %v353
    %v355 = vrot.slane %v354, 1
    %v356 = vadd.f32 %v354, %v355
    %v357 = vadd.f32 %v199, %v207
    %v358 = vrot.slane %v357, 4
    %v359 = vadd.f32 %v357, %v358
    %v360 = vrot.slane %v359, 2
    %v361 = vadd.f32 %v359, %v360
    %v362 = vrot.slane %v361, 1
    %v363 = vadd.f32 %v361, %v362
    %v364 = vadd.f32 %v200, %v208
    %v365 = vrot.slane %v364, 4
    %v366 = vadd.f32 %v364, %v365
    %v367 = vrot.slane %v366, 2
    %v368 = vadd.f32 %v366, %v367
    %v369 = vrot.slane %v368, 1
    %v370 = vadd.f32 %v368, %v369
    %v371 = vadd.f32 %v201, %v209
    %v372 = vrot.slane %v371, 4
    %v373 = vadd.f32 %v371, %v372
    %v374 = vrot.slane %v373, 2
    %v375 = vadd.f32 %v373, %v374
    %v376 = vrot.slane %v375, 1
    %v377 = vadd.f32 %v375, %v376
    %v378 = vadd.f32 %v210, %v218
    %v379 = vrot.slane %v378, 4
    %v380 = vadd.f32 %v378, %v379
    %v381 = vrot.slane %v380, 2
    %v382 = vadd.f32 %v380, %v381
    %v383 = vrot.slane %v382, 1
    %v384 = vadd.f32 %v382, %v383
    %v385 = vadd.f32 %v211, %v219
    %v386 = vrot.slane %v385, 4
    %v387 = vadd.f32 %v385, %v386
    %v388 = vrot.slane %v387, 2
    %v389 = vadd.f32 %v387, %v388
    %v390 = vrot.slane %v389, 1
    %v391 = vadd.f32 %v389, %v390
    %v392 = vadd.f32 %v212, %v220
    %v393 = vrot.slane %v392, 4
    %v394 = vadd.f32 %v392, %v393
    %v395 = vrot.slane %v394, 2
    %v396 = vadd.f32 %v394, %v395
    %v397 = vrot.slane %v396, 1
    %v398 = vadd.f32 %v396, %v397
    %v399 = vadd.f32 %v213, %v221
    %v400 = vrot.slane %v399, 4
    %v401 = vadd.f32 %v399, %v400
    %v402 = vrot.slane %v401, 2
    %v403 = vadd.f32 %v401, %v402
    %v404 = vrot.slane %v403, 1
    %v405 = vadd.f32 %v403, %v404
    %v406 = vadd.f32 %v214, %v222
    %v407 = vrot.slane %v406, 4
    %v408 = vadd.f32 %v406, %v407
    %v409 = vrot.slane %v408, 2
    %v410 = vadd.f32 %v408, %v409
    %v411 = vrot.slane %v410, 1
    %v412 = vadd.f32 %v410, %v411
    %v413 = vadd.f32 %v215, %v223
    %v414 = vrot.slane %v413, 4
    %v415 = vadd.f32 %v413, %v414
    %v416 = vrot.slane %v415, 2
    %v417 = vadd.f32 %v415, %v416
    %v418 = vrot.slane %v417, 1
    %v419 = vadd.f32 %v417, %v418
    %v420 = vadd.f32 %v216, %v224
    %v421 = vrot.slane %v420, 4
    %v422 = vadd.f32 %v420, %v421
    %v423 = vrot.slane %v422, 2
    %v424 = vadd.f32 %v422, %v423
    %v425 = vrot.slane %v424, 1
    %v426 = vadd.f32 %v424, %v425
    %v427 = vadd.f32 %v217, %v225
    %v428 = vrot.slane %v427, 4
    %v429 = vadd.f32 %v427, %v428
    %v430 = vrot.slane %v429, 2
    %v431 = vadd.f32 %v429, %v430
    %v432 = vrot.slane %v431, 1
    %v433 = vadd.f32 %v431, %v432
    %v434 = vadd.f32 %v226, %v234
    %v435 = vrot.slane %v434, 4
    %v436 = vadd.f32 %v434, %v435
    %v437 = vrot.slane %v436, 2
    %v438 = vadd.f32 %v436, %v437
    %v439 = vrot.slane %v438, 1
    %v440 = vadd.f32 %v438, %v439
    %v441 = vadd.f32 %v227, %v235
    %v442 = vrot.slane %v441, 4
    %v443 = vadd.f32 %v441, %v442
    %v444 = vrot.slane %v443, 2
    %v445 = vadd.f32 %v443, %v444
    %v446 = vrot.slane %v445, 1
    %v447 = vadd.f32 %v445, %v446
    %v448 = vadd.f32 %v228, %v236
    %v449 = vrot.slane %v448, 4
    %v450 = vadd.f32 %v448, %v449
    %v451 = vrot.slane %v450, 2
    %v452 = vadd.f32 %v450, %v451
    %v453 = vrot.slane %v452, 1
    %v454 = vadd.f32 %v452, %v453
    %v455 = vadd.f32 %v229, %v237
    %v456 = vrot.slane %v455, 4
    %v457 = vadd.f32 %v455, %v456
    %v458 = vrot.slane %v457, 2
    %v459 = vadd.f32 %v457, %v458
    %v460 = vrot.slane %v459, 1
    %v461 = vadd.f32 %v459, %v460
    %v462 = vadd.f32 %v230, %v238
    %v463 = vrot.slane %v462, 4
    %v464 = vadd.f32 %v462, %v463
    %v465 = vrot.slane %v464, 2
    %v466 = vadd.f32 %v464, %v465
    %v467 = vrot.slane %v466, 1
    %v468 = vadd.f32 %v466, %v467
    %v469 = vadd.f32 %v231, %v239
    %v470 = vrot.slane %v469, 4
    %v471 = vadd.f32 %v469, %v470
    %v472 = vrot.slane %v471, 2
    %v473 = vadd.f32 %v471, %v472
    %v474 = vrot.slane %v473, 1
    %v475 = vadd.f32 %v473, %v474
    %v476 = vadd.f32 %v232, %v240
    %v477 = vrot.slane %v476, 4
    %v478 = vadd.f32 %v476, %v477
    %v479 = vrot.slane %v478, 2
    %v480 = vadd.f32 %v478, %v479
    %v481 = vrot.slane %v480, 1
    %v482 = vadd.f32 %v480, %v481
    %v483 = vadd.f32 %v233, %v241
    %v484 = vrot.slane %v483, 4
    %v485 = vadd.f32 %v483, %v484
    %v486 = vrot.slane %v485, 2
    %v487 = vadd.f32 %v485, %v486
    %v488 = vrot.slane %v487, 1
    %v489 = vadd.f32 %v487, %v488
    %v490 = vadd.f32 %v242, %v250
    %v491 = vrot.slane %v490, 4
    %v492 = vadd.f32 %v490, %v491
    %v493 = vrot.slane %v492, 2
    %v494 = vadd.f32 %v492, %v493
    %v495 = vrot.slane %v494, 1
    %v496 = vadd.f32 %v494, %v495
    %v497 = vadd.f32 %v243, %v251
    %v498 = vrot.slane %v497, 4
    %v499 = vadd.f32 %v497, %v498
    %v500 = vrot.slane %v499, 2
    %v501 = vadd.f32 %v499, %v500
    %v502 = vrot.slane %v501, 1
    %v503 = vadd.f32 %v501, %v502
    %v504 = vadd.f32 %v244, %v252
    %v505 = vrot.slane %v504, 4
    %v506 = vadd.f32 %v504, %v505
    %v507 = vrot.slane %v506, 2
    %v508 = vadd.f32 %v506, %v507
    %v509 = vrot.slane %v508, 1
    %v510 = vadd.f32 %v508, %v509
    %v511 = vadd.f32 %v245, %v253
    %v512 = vrot.slane %v511, 4
    %v513 = vadd.f32 %v511, %v512
    %v514 = vrot.slane %v513, 2
    %v515 = vadd.f32 %v513, %v514
    %v516 = vrot.slane %v515, 1
    %v517 = vadd.f32 %v515, %v516
    %v518 = vadd.f32 %v246, %v254
    %v519 = vrot.slane %v518, 4
    %v520 = vadd.f32 %v518, %v519
    %v521 = vrot.slane %v520, 2
    %v522 = vadd.f32 %v520, %v521
    %v523 = vrot.slane %v522, 1
    %v524 = vadd.f32 %v522, %v523
    %v525 = vadd.f32 %v247, %v255
    %v526 = vrot.slane %v525, 4
    %v527 = vadd.f32 %v525, %v526
    %v528 = vrot.slane %v527, 2
    %v529 = vadd.f32 %v527, %v528
    %v530 = vrot.slane %v529, 1
    %v531 = vadd.f32 %v529, %v530
    %v532 = vadd.f32 %v248, %v256
    %v533 = vrot.slane %v532, 4
    %v534 = vadd.f32 %v532, %v533
    %v535 = vrot.slane %v534, 2
    %v536 = vadd.f32 %v534, %v535
    %v537 = vrot.slane %v536, 1
    %v538 = vadd.f32 %v536, %v537
    %v539 = vadd.f32 %v249, %v257
    %v540 = vrot.slane %v539, 4
    %v541 = vadd.f32 %v539, %v540
    %v542 = vrot.slane %v541, 2
    %v543 = vadd.f32 %v541, %v542
    %v544 = vrot.slane %v543, 1
    %v545 = vadd.f32 %v543, %v544
    %v546 = vadd.f32 %v258, %v266
    %v547 = vrot.slane %v546, 4
    %v548 = vadd.f32 %v546, %v547
    %v549 = vrot.slane %v548, 2
    %v550 = vadd.f32 %v548, %v549
    %v551 = vrot.slane %v550, 1
    %v552 = vadd.f32 %v550, %v551
    %v553 = vadd.f32 %v259, %v267
    %v554 = vrot.slane %v553, 4
    %v555 = vadd.f32 %v553, %v554
    %v556 = vrot.slane %v555, 2
    %v557 = vadd.f32 %v555, %v556
    %v558 = vrot.slane %v557, 1
    %v559 = vadd.f32 %v557, %v558
    %v560 = vadd.f32 %v260, %v268
    %v561 = vrot.slane %v560, 4
    %v562 = vadd.f32 %v560, %v561
    %v563 = vrot.slane %v562, 2
    %v564 = vadd.f32 %v562, %v563
    %v565 = vrot.slane %v564, 1
    %v566 = vadd.f32 %v564, %v565
    %v567 = vadd.f32 %v261, %v269
    %v568 = vrot.slane %v567, 4
    %v569 = vadd.f32 %v567, %v568
    %v570 = vrot.slane %v569, 2
    %v571 = vadd.f32 %v569, %v570
    %v572 = vrot.slane %v571, 1
    %v573 = vadd.f32 %v571, %v572
    %v574 = vadd.f32 %v262, %v270
    %v575 = vrot.slane %v574, 4
    %v576 = vadd.f32 %v574, %v575
    %v577 = vrot.slane %v576, 2
    %v578 = vadd.f32 %v576, %v577
    %v579 = vrot.slane %v578, 1
    %v580 = vadd.f32 %v578, %v579
    %v581 = vadd.f32 %v263, %v271
    %v582 = vrot.slane %v581, 4
    %v583 = vadd.f32 %v581, %v582
    %v584 = vrot.slane %v583, 2
    %v585 = vadd.f32 %v583, %v584
    %v586 = vrot.slane %v585, 1
    %v587 = vadd.f32 %v585, %v586
    %v588 = vadd.f32 %v264, %v272
    %v589 = vrot.slane %v588, 4
    %v590 = vadd.f32 %v588, %v589
    %v591 = vrot.slane %v590, 2
    %v592 = vadd.f32 %v590, %v591
    %v593 = vrot.slane %v592, 1
    %v594 = vadd.f32 %v592, %v593
    %v595 = vadd.f32 %v265, %v273
    %v596 = vrot.slane %v595, 4
    %v597 = vadd.f32 %v595, %v596
    %v598 = vrot.slane %v597, 2
    %v599 = vadd.f32 %v597, %v598
    %v600 = vrot.slane %v599, 1
    %v601 = vadd.f32 %v599, %v600
    %v602 = vadd.f32 %v274, %v282
    %v603 = vrot.slane %v602, 4
    %v604 = vadd.f32 %v602, %v603
    %v605 = vrot.slane %v604, 2
    %v606 = vadd.f32 %v604, %v605
    %v607 = vrot.slane %v606, 1
    %v608 = vadd.f32 %v606, %v607
    %v609 = vadd.f32 %v275, %v283
    %v610 = vrot.slane %v609, 4
    %v611 = vadd.f32 %v609, %v610
    %v612 = vrot.slane %v611, 2
    %v613 = vadd.f32 %v611, %v612
    %v614 = vrot.slane %v613, 1
    %v615 = vadd.f32 %v613, %v614
    %v616 = vadd.f32 %v276, %v284
    %v617 = vrot.slane %v616, 4
    %v618 = vadd.f32 %v616, %v617
    %v619 = vrot.slane %v618, 2
    %v620 = vadd.f32 %v618, %v619
    %v621 = vrot.slane %v620, 1
    %v622 = vadd.f32 %v620, %v621
    %v623 = vadd.f32 %v277, %v285
    %v624 = vrot.slane %v623, 4
    %v625 = vadd.f32 %v623, %v624
    %v626 = vrot.slane %v625, 2
    %v627 = vadd.f32 %v625, %v626
    %v628 = vrot.slane %v627, 1
    %v629 = vadd.f32 %v627, %v628
    %v630 = vadd.f32 %v278, %v286
    %v631 = vrot.slane %v630, 4
    %v632 = vadd.f32 %v630, %v631
    %v633 = vrot.slane %v632, 2
    %v634 = vadd.f32 %v632, %v633
    %v635 = vrot.slane %v634, 1
    %v636 = vadd.f32 %v634, %v635
    %v637 = vadd.f32 %v279, %v287
    %v638 = vrot.slane %v637, 4
    %v639 = vadd.f32 %v637, %v638
    %v640 = vrot.slane %v639, 2
    %v641 = vadd.f32 %v639, %v640
    %v642 = vrot.slane %v641, 1
    %v643 = vadd.f32 %v641, %v642
    %v644 = vadd.f32 %v280, %v288
    %v645 = vrot.slane %v644, 4
    %v646 = vadd.f32 %v644, %v645
    %v647 = vrot.slane %v646, 2
    %v648 = vadd.f32 %v646, %v647
    %v649 = vrot.slane %v648, 1
    %v650 = vadd.f32 %v648, %v649
    %v651 = vadd.f32 %v281, %v289
    %v652 = vrot.slane %v651, 4
    %v653 = vadd.f32 %v651, %v652
    %v654 = vrot.slane %v653, 2
    %v655 = vadd.f32 %v653, %v654
    %v656 = vrot.slane %v655, 1
    %v657 = vadd.f32 %v655, %v656
    %v658 = vadd.f32 %v290, %v298
    %v659 = vrot.slane %v658, 4
    %v660 = vadd.f32 %v658, %v659
    %v661 = vrot.slane %v660, 2
    %v662 = vadd.f32 %v660, %v661
    %v663 = vrot.slane %v662, 1
    %v664 = vadd.f32 %v662, %v663
    %v665 = vadd.f32 %v291, %v299
    %v666 = vrot.slane %v665, 4
    %v667 = vadd.f32 %v665, %v666
    %v668 = vrot.slane %v667, 2
    %v669 = vadd.f32 %v667, %v668
    %v670 = vrot.slane %v669, 1
    %v671 = vadd.f32 %v669, %v670
    %v672 = vadd.f32 %v292, %v300
    %v673 = vrot.slane %v672, 4
    %v674 = vadd.f32 %v672, %v673
    %v675 = vrot.slane %v674, 2
    %v676 = vadd.f32 %v674, %v675
    %v677 = vrot.slane %v676, 1
    %v678 = vadd.f32 %v676, %v677
    %v679 = vadd.f32 %v293, %v301
    %v680 = vrot.slane %v679, 4
    %v681 = vadd.f32 %v679, %v680
    %v682 = vrot.slane %v681, 2
    %v683 = vadd.f32 %v681, %v682
    %v684 = vrot.slane %v683, 1
    %v685 = vadd.f32 %v683, %v684
    %v686 = vadd.f32 %v294, %v302
    %v687 = vrot.slane %v686, 4
    %v688 = vadd.f32 %v686, %v687
    %v689 = vrot.slane %v688, 2
    %v690 = vadd.f32 %v688, %v689
    %v691 = vrot.slane %v690, 1
    %v692 = vadd.f32 %v690, %v691
    %v693 = vadd.f32 %v295, %v303
    %v694 = vrot.slane %v693, 4
    %v695 = vadd.f32 %v693, %v694
    %v696 = vrot.slane %v695, 2
    %v697 = vadd.f32 %v695, %v696
    %v698 = vrot.slane %v697, 1
    %v699 = vadd.f32 %v697, %v698
    %v700 = vadd.f32 %v296, %v304
    %v701 = vrot.slane %v700, 4
    %v702 = vadd.f32 %v700, %v701
    %v703 = vrot.slane %v702, 2
    %v704 = vadd.f32 %v702, %v703
    %v705 = vrot.slane %v704, 1
    %v706 = vadd.f32 %v704, %v705
    %v707 = vadd.f32 %v297, %v305
    %v708 = vrot.slane %v707, 4
    %v709 = vadd.f32 %v707, %v708
    %v710 = vrot.slane %v709, 2
    %v711 = vadd.f32 %v709, %v710
    %v712 = vrot.slane %v711, 1
    %v713 = vadd.f32 %v711, %v712
    %v714 = vadd.f32 %v306, %v314
    %v715 = vrot.slane %v714, 4
    %v716 = vadd.f32 %v714, %v715
    %v717 = vrot.slane %v716, 2
    %v718 = vadd.f32 %v716, %v717
    %v719 = vrot.slane %v718, 1
    %v720 = vadd.f32 %v718, %v719
    %v721 = vadd.f32 %v307, %v315
    %v722 = vrot.slane %v721, 4
    %v723 = vadd.f32 %v721, %v722
    %v724 = vrot.slane %v723, 2
    %v725 = vadd.f32 %v723, %v724
    %v726 = vrot.slane %v725, 1
    %v727 = vadd.f32 %v725, %v726
    %v728 = vadd.f32 %v308, %v316
    %v729 = vrot.slane %v728, 4
    %v730 = vadd.f32 %v728, %v729
    %v731 = vrot.slane %v730, 2
    %v732 = vadd.f32 %v730, %v731
    %v733 = vrot.slane %v732, 1
    %v734 = vadd.f32 %v732, %v733
    %v735 = vadd.f32 %v309, %v317
    %v736 = vrot.slane %v735, 4
    %v737 = vadd.f32 %v735, %v736
    %v738 = vrot.slane %v737, 2
    %v739 = vadd.f32 %v737, %v738
    %v740 = vrot.slane %v739, 1
    %v741 = vadd.f32 %v739, %v740
    %v742 = vadd.f32 %v310, %v318
    %v743 = vrot.slane %v742, 4
    %v744 = vadd.f32 %v742, %v743
    %v745 = vrot.slane %v744, 2
    %v746 = vadd.f32 %v744, %v745
    %v747 = vrot.slane %v746, 1
    %v748 = vadd.f32 %v746, %v747
    %v749 = vadd.f32 %v311, %v319
    %v750 = vrot.slane %v749, 4
    %v751 = vadd.f32 %v749, %v750
    %v752 = vrot.slane %v751, 2
    %v753 = vadd.f32 %v751, %v752
    %v754 = vrot.slane %v753, 1
    %v755 = vadd.f32 %v753, %v754
    %v756 = vadd.f32 %v312, %v320
    %v757 = vrot.slane %v756, 4
    %v758 = vadd.f32 %v756, %v757
    %v759 = vrot.slane %v758, 2
    %v760 = vadd.f32 %v758, %v759
    %v761 = vrot.slane %v760, 1
    %v762 = vadd.f32 %v760, %v761
    %v763 = vadd.f32 %v313, %v321
    %v764 = vrot.slane %v763, 4
    %v765 = vadd.f32 %v763, %v764
    %v766 = vrot.slane %v765, 2
    %v767 = vadd.f32 %v765, %v766
    %v768 = vrot.slane %v767, 1
    %v769 = vadd.f32 %v767, %v768
    %v770 = vld [vmem:[#allocation5] sm:$0xff]
    %v771 = vld [vmem:[#allocation5 + $0x8] sm:$0xff]
    %v772 = vld [vmem:[#allocation5 + $0x10] sm:$0xff]
    %v773 = vld [vmem:[#allocation5 + $0x18] sm:$0xff]
    %v774 = vld [vmem:[#allocation5 + $0x20] sm:$0xff]
    %v775 = vld [vmem:[#allocation5 + $0x28] sm:$0xff]
    %v776 = vld [vmem:[#allocation5 + $0x30] sm:$0xff]
    %v777 = vld [vmem:[#allocation5 + $0x38] sm:$0xff]
    %v778 = vld [vmem:[#allocation5 + $0x40] sm:$0xff]
    %v779 = vld [vmem:[#allocation5 + $0x48] sm:$0xff]
    %v780 = vld [vmem:[#allocation5 + $0x50] sm:$0xff]
    %v781 = vld [vmem:[#allocation5 + $0x58] sm:$0xff]
    %v782 = vld [vmem:[#allocation5 + $0x60] sm:$0xff]
    %v783 = vld [vmem:[#allocation5 + $0x68] sm:$0xff]
    %v784 = vld [vmem:[#allocation5 + $0x70] sm:$0xff]
    %v785 = vld [vmem:[#allocation5 + $0x78] sm:$0xff]
    %v786 = vld [vmem:[#allocation5 + $0x80] sm:$0xff]
    %v787 = vld [vmem:[#allocation5 + $0x88] sm:$0xff]
    %v788 = vld [vmem:[#allocation5 + $0x90] sm:$0xff]
    %v789 = vld [vmem:[#allocation5 + $0x98] sm:$0xff]
    %v790 = vld [vmem:[#allocation5 + $0xa0] sm:$0xff]
    %v791 = vld [vmem:[#allocation5 + $0xa8] sm:$0xff]
    %v792 = vld [vmem:[#allocation5 + $0xb0] sm:$0xff]
    %v793 = vld [vmem:[#allocation5 + $0xb8] sm:$0xff]
    %v794 = vld [vmem:[#allocation5 + $0xc0] sm:$0xff]
    %v795 = vld [vmem:[#allocation5 + $0xc8] sm:$0xff]
    %v796 = vld [vmem:[#allocation5 + $0xd0] sm:$0xff]
    %v797 = vld [vmem:[#allocation5 + $0xd8] sm:$0xff]
    %v798 = vld [vmem:[#allocation5 + $0xe0] sm:$0xff]
    %v799 = vld [vmem:[#allocation5 + $0xe8] sm:$0xff]
    %v800 = vld [vmem:[#allocation5 + $0xf0] sm:$0xff]
    %v801 = vld [vmem:[#allocation5 + $0xf8] sm:$0xff]
    %v802 = vld [vmem:[#allocation5 + $0x100] sm:$0xff]
    %v803 = vld [vmem:[#allocation5 + $0x108] sm:$0xff]
    %v804 = vld [vmem:[#allocation5 + $0x110] sm:$0xff]
    %v805 = vld [vmem:[#allocation5 + $0x118] sm:$0xff]
    %v806 = vld [vmem:[#allocation5 + $0x120] sm:$0xff]
    %v807 = vld [vmem:[#allocation5 + $0x128] sm:$0xff]
    %v808 = vld [vmem:[#allocation5 + $0x130] sm:$0xff]
    %v809 = vld [vmem:[#allocation5 + $0x138] sm:$0xff]
    %v810 = vld [vmem:[#allocation5 + $0x140] sm:$0xff]
    %v811 = vld [vmem:[#allocation5 + $0x148] sm:$0xff]
    %v812 = vld [vmem:[#allocation5 + $0x150] sm:$0xff]
    %v813 = vld [vmem:[#allocation5 + $0x158] sm:$0xff]
    %v814 = vld [vmem:[#allocation5 + $0x160] sm:$0xff]
    %v815 = vld [vmem:[#allocation5 + $0x168] sm:$0xff]
    %v816 = vld [vmem:[#allocation5 + $0x170] sm:$0xff]
    %v817 = vld [vmem:[#allocation5 + $0x178] sm:$0xff]
    %v818 = vld [vmem:[#allocation5 + $0x180] sm:$0xff]
    %v819 = vld [vmem:[#allocation5 + $0x188] sm:$0xff]
    %v820 = vld [vmem:[#allocation5 + $0x190] sm:$0xff]
    %v821 = vld [vmem:[#allocation5 + $0x198] sm:$0xff]
    %v822 = vld [vmem:[#allocation5 + $0x1a0] sm:$0xff]
    %v823 = vld [vmem:[#allocation5 + $0x1a8] sm:$0xff]
    %v824 = vld [vmem:[#allocation5 + $0x1b0] sm:$0xff]
    %v825 = vld [vmem:[#allocation5 + $0x1b8] sm:$0xff]
    %v826 = vld [vmem:[#allocation5 + $0x1c0] sm:$0xff]
    %v827 = vld [vmem:[#allocation5 + $0x1c8] sm:$0xff]
    %v828 = vld [vmem:[#allocation5 + $0x1d0] sm:$0xff]
    %v829 = vld [vmem:[#allocation5 + $0x1d8] sm:$0xff]
    %v830 = vld [vmem:[#allocation5 + $0x1e0] sm:$0xff]
    %v831 = vld [vmem:[#allocation5 + $0x1e8] sm:$0xff]
    %v832 = vld [vmem:[#allocation5 + $0x1f0] sm:$0xff]
    %v833 = vld [vmem:[#allocation5 + $0x1f8] sm:$0xff]
    %v834 = vld [vmem:[#allocation5 + $0x200] sm:$0xff]
    %v835 = vld [vmem:[#allocation5 + $0x208] sm:$0xff]
    %v836 = vld [vmem:[#allocation5 + $0x210] sm:$0xff]
    %v837 = vld [vmem:[#allocation5 + $0x218] sm:$0xff]
    %v838 = vld [vmem:[#allocation5 + $0x220] sm:$0xff]
    %v839 = vld [vmem:[#allocation5 + $0x228] sm:$0xff]
    %v840 = vld [vmem:[#allocation5 + $0x230] sm:$0xff]
    %v841 = vld [vmem:[#allocation5 + $0x238] sm:$0xff]
    %v842 = vld [vmem:[#allocation5 + $0x240] sm:$0xff]
    %v843 = vld [vmem:[#allocation5 + $0x248] sm:$0xff]
    %v844 = vld [vmem:[#allocation5 + $0x250] sm:$0xff]
    %v845 = vld [vmem:[#allocation5 + $0x258] sm:$0xff]
    %v846 = vld [vmem:[#allocation5 + $0x260] sm:$0xff]
    %v847 = vld [vmem:[#allocation5 + $0x268] sm:$0xff]
    %v848 = vld [vmem:[#allocation5 + $0x270] sm:$0xff]
    %v849 = vld [vmem:[#allocation5 + $0x278] sm:$0xff]
    %v850 = vld [vmem:[#allocation5 + $0x280] sm:$0xff]
    %v851 = vld [vmem:[#allocation5 + $0x288] sm:$0xff]
    %v852 = vld [vmem:[#allocation5 + $0x290] sm:$0xff]
    %v853 = vld [vmem:[#allocation5 + $0x298] sm:$0xff]
    %v854 = vld [vmem:[#allocation5 + $0x2a0] sm:$0xff]
    %v855 = vld [vmem:[#allocation5 + $0x2a8] sm:$0xff]
    %v856 = vld [vmem:[#allocation5 + $0x2b0] sm:$0xff]
    %v857 = vld [vmem:[#allocation5 + $0x2b8] sm:$0xff]
    %v858 = vld [vmem:[#allocation5 + $0x2c0] sm:$0xff]
    %v859 = vld [vmem:[#allocation5 + $0x2c8] sm:$0xff]
    %v860 = vld [vmem:[#allocation5 + $0x2d0] sm:$0xff]
    %v861 = vld [vmem:[#allocation5 + $0x2d8] sm:$0xff]
    %v862 = vld [vmem:[#allocation5 + $0x2e0] sm:$0xff]
    %v863 = vld [vmem:[#allocation5 + $0x2e8] sm:$0xff]
    %v864 = vld [vmem:[#allocation5 + $0x2f0] sm:$0xff]
    %v865 = vld [vmem:[#allocation5 + $0x2f8] sm:$0xff]
    %v866 = vld [vmem:[#allocation5 + $0x300] sm:$0xff]
    %v867 = vld [vmem:[#allocation5 + $0x308] sm:$0xff]
    %v868 = vld [vmem:[#allocation5 + $0x310] sm:$0xff]
    %v869 = vld [vmem:[#allocation5 + $0x318] sm:$0xff]
    %v870 = vld [vmem:[#allocation5 + $0x320] sm:$0xff]
    %v871 = vld [vmem:[#allocation5 + $0x328] sm:$0xff]
    %v872 = vld [vmem:[#allocation5 + $0x330] sm:$0xff]
    %v873 = vld [vmem:[#allocation5 + $0x338] sm:$0xff]
    %v874 = vld [vmem:[#allocation5 + $0x340] sm:$0xff]
    %v875 = vld [vmem:[#allocation5 + $0x348] sm:$0xff]
    %v876 = vld [vmem:[#allocation5 + $0x350] sm:$0xff]
    %v877 = vld [vmem:[#allocation5 + $0x358] sm:$0xff]
    %v878 = vld [vmem:[#allocation5 + $0x360] sm:$0xff]
    %v879 = vld [vmem:[#allocation5 + $0x368] sm:$0xff]
    %v880 = vld [vmem:[#allocation5 + $0x370] sm:$0xff]
    %v881 = vld [vmem:[#allocation5 + $0x378] sm:$0xff]
    %v882 = vld [vmem:[#allocation5 + $0x380] sm:$0xff]
    %v883 = vld [vmem:[#allocation5 + $0x388] sm:$0xff]
    %v884 = vld [vmem:[#allocation5 + $0x390] sm:$0xff]
    %v885 = vld [vmem:[#allocation5 + $0x398] sm:$0xff]
    %v886 = vld [vmem:[#allocation5 + $0x3a0] sm:$0xff]
    %v887 = vld [vmem:[#allocation5 + $0x3a8] sm:$0xff]
    %v888 = vld [vmem:[#allocation5 + $0x3b0] sm:$0xff]
    %v889 = vld [vmem:[#allocation5 + $0x3b8] sm:$0xff]
    %v890 = vld [vmem:[#allocation5 + $0x3c0] sm:$0xff]
    %v891 = vld [vmem:[#allocation5 + $0x3c8] sm:$0xff]
    %v892 = vld [vmem:[#allocation5 + $0x3d0] sm:$0xff]
    %v893 = vld [vmem:[#allocation5 + $0x3d8] sm:$0xff]
    %v894 = vld [vmem:[#allocation5 + $0x3e0] sm:$0xff]
    %v895 = vld [vmem:[#allocation5 + $0x3e8] sm:$0xff]
    %v896 = vld [vmem:[#allocation5 + $0x3f0] sm:$0xff]
    %v897 = vld [vmem:[#allocation5 + $0x3f8] sm:$0xff]
    %v898 = vld [vmem:[#allocation5 + $0x400] sm:$0xff]
    %v899 = vld [vmem:[#allocation5 + $0x408] sm:$0xff]
    %v900 = vld [vmem:[#allocation5 + $0x410] sm:$0xff]
    %v901 = vld [vmem:[#allocation5 + $0x418] sm:$0xff]
    %v902 = vld [vmem:[#allocation5 + $0x420] sm:$0xff]
    %v903 = vld [vmem:[#allocation5 + $0x428] sm:$0xff]
    %v904 = vld [vmem:[#allocation5 + $0x430] sm:$0xff]
    %v905 = vld [vmem:[#allocation5 + $0x438] sm:$0xff]
    %v906 = vld [vmem:[#allocation5 + $0x440] sm:$0xff]
    %v907 = vld [vmem:[#allocation5 + $0x448] sm:$0xff]
    %v908 = vld [vmem:[#allocation5 + $0x450] sm:$0xff]
    %v909 = vld [vmem:[#allocation5 + $0x458] sm:$0xff]
    %v910 = vld [vmem:[#allocation5 + $0x460] sm:$0xff]
    %v911 = vld [vmem:[#allocation5 + $0x468] sm:$0xff]
    %v912 = vld [vmem:[#allocation5 + $0x470] sm:$0xff]
    %v913 = vld [vmem:[#allocation5 + $0x478] sm:$0xff]
    %v914 = vld [vmem:[#allocation5 + $0x480] sm:$0xff]
    %v915 = vld [vmem:[#allocation5 + $0x488] sm:$0xff]
    %v916 = vld [vmem:[#allocation5 + $0x490] sm:$0xff]
    %v917 = vld [vmem:[#allocation5 + $0x498] sm:$0xff]
    %v918 = vld [vmem:[#allocation5 + $0x4a0] sm:$0xff]
    %v919 = vld [vmem:[#allocation5 + $0x4a8] sm:$0xff]
    %v920 = vld [vmem:[#allocation5 + $0x4b0] sm:$0xff]
    %v921 = vld [vmem:[#allocation5 + $0x4b8] sm:$0xff]
    %v922 = vld [vmem:[#allocation5 + $0x4c0] sm:$0xff]
    %v923 = vld [vmem:[#allocation5 + $0x4c8] sm:$0xff]
    %v924 = vld [vmem:[#allocation5 + $0x4d0] sm:$0xff]
    %v925 = vld [vmem:[#allocation5 + $0x4d8] sm:$0xff]
    %v926 = vld [vmem:[#allocation5 + $0x4e0] sm:$0xff]
    %v927 = vld [vmem:[#allocation5 + $0x4e8] sm:$0xff]
    %v928 = vld [vmem:[#allocation5 + $0x4f0] sm:$0xff]
    %v929 = vld [vmem:[#allocation5 + $0x4f8] sm:$0xff]
    %v930 = vld [vmem:[#allocation5 + $0x500] sm:$0xff]
    %v931 = vld [vmem:[#allocation5 + $0x508] sm:$0xff]
    %v932 = vld [vmem:[#allocation5 + $0x510] sm:$0xff]
    %v933 = vld [vmem:[#allocation5 + $0x518] sm:$0xff]
    %v934 = vld [vmem:[#allocation5 + $0x520] sm:$0xff]
    %v935 = vld [vmem:[#allocation5 + $0x528] sm:$0xff]
    %v936 = vld [vmem:[#allocation5 + $0x530] sm:$0xff]
    %v937 = vld [vmem:[#allocation5 + $0x538] sm:$0xff]
    %v938 = vld [vmem:[#allocation5 + $0x540] sm:$0xff]
    %v939 = vld [vmem:[#allocation5 + $0x548] sm:$0xff]
    %v940 = vld [vmem:[#allocation5 + $0x550] sm:$0xff]
    %v941 = vld [vmem:[#allocation5 + $0x558] sm:$0xff]
    %v942 = vld [vmem:[#allocation5 + $0x560] sm:$0xff]
    %v943 = vld [vmem:[#allocation5 + $0x568] sm:$0xff]
    %v944 = vld [vmem:[#allocation5 + $0x570] sm:$0xff]
    %v945 = vld [vmem:[#allocation5 + $0x578] sm:$0xff]
    %v946 = vld [vmem:[#allocation5 + $0x580] sm:$0xff]
    %v947 = vld [vmem:[#allocation5 + $0x588] sm:$0xff]
    %v948 = vld [vmem:[#allocation5 + $0x590] sm:$0xff]
    %v949 = vld [vmem:[#allocation5 + $0x598] sm:$0xff]
    %v950 = vld [vmem:[#allocation5 + $0x5a0] sm:$0xff]
    %v951 = vld [vmem:[#allocation5 + $0x5a8] sm:$0xff]
    %v952 = vld [vmem:[#allocation5 + $0x5b0] sm:$0xff]
    %v953 = vld [vmem:[#allocation5 + $0x5b8] sm:$0xff]
    %v954 = vld [vmem:[#allocation5 + $0x5c0] sm:$0xff]
    %v955 = vld [vmem:[#allocation5 + $0x5c8] sm:$0xff]
    %v956 = vld [vmem:[#allocation5 + $0x5d0] sm:$0xff]
    %v957 = vld [vmem:[#allocation5 + $0x5d8] sm:$0xff]
    %v958 = vld [vmem:[#allocation5 + $0x5e0] sm:$0xff]
    %v959 = vld [vmem:[#allocation5 + $0x5e8] sm:$0xff]
    %v960 = vld [vmem:[#allocation5 + $0x5f0] sm:$0xff]
    %v961 = vld [vmem:[#allocation5 + $0x5f8] sm:$0xff]
    %v962 = vld [vmem:[#allocation5 + $0x600] sm:$0xff]
    %v963 = vld [vmem:[#allocation5 + $0x608] sm:$0xff]
    %v964 = vld [vmem:[#allocation5 + $0x610] sm:$0xff]
    %v965 = vld [vmem:[#allocation5 + $0x618] sm:$0xff]
    %v966 = vld [vmem:[#allocation5 + $0x620] sm:$0xff]
    %v967 = vld [vmem:[#allocation5 + $0x628] sm:$0xff]
    %v968 = vld [vmem:[#allocation5 + $0x630] sm:$0xff]
    %v969 = vld [vmem:[#allocation5 + $0x638] sm:$0xff]
    %v970 = vld [vmem:[#allocation5 + $0x640] sm:$0xff]
    %v971 = vld [vmem:[#allocation5 + $0x648] sm:$0xff]
    %v972 = vld [vmem:[#allocation5 + $0x650] sm:$0xff]
    %v973 = vld [vmem:[#allocation5 + $0x658] sm:$0xff]
    %v974 = vld [vmem:[#allocation5 + $0x660] sm:$0xff]
    %v975 = vld [vmem:[#allocation5 + $0x668] sm:$0xff]
    %v976 = vld [vmem:[#allocation5 + $0x670] sm:$0xff]
    %v977 = vld [vmem:[#allocation5 + $0x678] sm:$0xff]
    %v978 = vld [vmem:[#allocation5 + $0x680] sm:$0xff]
    %v979 = vld [vmem:[#allocation5 + $0x688] sm:$0xff]
    %v980 = vld [vmem:[#allocation5 + $0x690] sm:$0xff]
    %v981 = vld [vmem:[#allocation5 + $0x698] sm:$0xff]
    %v982 = vld [vmem:[#allocation5 + $0x6a0] sm:$0xff]
    %v983 = vld [vmem:[#allocation5 + $0x6a8] sm:$0xff]
    %v984 = vld [vmem:[#allocation5 + $0x6b0] sm:$0xff]
    %v985 = vld [vmem:[#allocation5 + $0x6b8] sm:$0xff]
    %v986 = vld [vmem:[#allocation5 + $0x6c0] sm:$0xff]
    %v987 = vld [vmem:[#allocation5 + $0x6c8] sm:$0xff]
    %v988 = vld [vmem:[#allocation5 + $0x6d0] sm:$0xff]
    %v989 = vld [vmem:[#allocation5 + $0x6d8] sm:$0xff]
    %v990 = vld [vmem:[#allocation5 + $0x6e0] sm:$0xff]
    %v991 = vld [vmem:[#allocation5 + $0x6e8] sm:$0xff]
    %v992 = vld [vmem:[#allocation5 + $0x6f0] sm:$0xff]
    %v993 = vld [vmem:[#allocation5 + $0x6f8] sm:$0xff]
    %v994 = vld [vmem:[#allocation5 + $0x700] sm:$0xff]
    %v995 = vld [vmem:[#allocation5 + $0x708] sm:$0xff]
    %v996 = vld [vmem:[#allocation5 + $0x710] sm:$0xff]
    %v997 = vld [vmem:[#allocation5 + $0x718] sm:$0xff]
    %v998 = vld [vmem:[#allocation5 + $0x720] sm:$0xff]
    %v999 = vld [vmem:[#allocation5 + $0x728] sm:$0xff]
    %v1000 = vld [vmem:[#allocation5 + $0x730] sm:$0xff]
    %v1001 = vld [vmem:[#allocation5 + $0x738] sm:$0xff]
    %v1002 = vld [vmem:[#allocation5 + $0x740] sm:$0xff]
    %v1003 = vld [vmem:[#allocation5 + $0x748] sm:$0xff]
    %v1004 = vld [vmem:[#allocation5 + $0x750] sm:$0xff]
    %v1005 = vld [vmem:[#allocation5 + $0x758] sm:$0xff]
    %v1006 = vld [vmem:[#allocation5 + $0x760] sm:$0xff]
    %v1007 = vld [vmem:[#allocation5 + $0x768] sm:$0xff]
    %v1008 = vld [vmem:[#allocation5 + $0x770] sm:$0xff]
    %v1009 = vld [vmem:[#allocation5 + $0x778] sm:$0xff]
    %v1010 = vld [vmem:[#allocation5 + $0x780] sm:$0xff]
    %v1011 = vld [vmem:[#allocation5 + $0x788] sm:$0xff]
    %v1012 = vld [vmem:[#allocation5 + $0x790] sm:$0xff]
    %v1013 = vld [vmem:[#allocation5 + $0x798] sm:$0xff]
    %v1014 = vld [vmem:[#allocation5 + $0x7a0] sm:$0xff]
    %v1015 = vld [vmem:[#allocation5 + $0x7a8] sm:$0xff]
    %v1016 = vld [vmem:[#allocation5 + $0x7b0] sm:$0xff]
    %v1017 = vld [vmem:[#allocation5 + $0x7b8] sm:$0xff]
    %v1018 = vld [vmem:[#allocation5 + $0x7c0] sm:$0xff]
    %v1019 = vld [vmem:[#allocation5 + $0x7c8] sm:$0xff]
    %v1020 = vld [vmem:[#allocation5 + $0x7d0] sm:$0xff]
    %v1021 = vld [vmem:[#allocation5 + $0x7d8] sm:$0xff]
    %v1022 = vld [vmem:[#allocation5 + $0x7e0] sm:$0xff]
    %v1023 = vld [vmem:[#allocation5 + $0x7e8] sm:$0xff]
    %v1024 = vld [vmem:[#allocation5 + $0x7f0] sm:$0xff]
    %v1025 = vld [vmem:[#allocation5 + $0x7f8] sm:$0xff]
    %v1026 = vld [vmem:[%s2] sm:$0x3]
    %v1028 = vlaneseq
    %v1029 = vshrl.u32 %v1028, 7
    %v1030 = vsub.s32 0, %v1029
    %v1031 = vrot.slane %v1026, %v1030
    %v1032 = vlaneseq
    %v1033 = vshrl.u32 %v1032, 7
    %v1034 = vsub.s32 1, %v1033
    %v1035 = vrot.slane %v1026, %v1034
    %vm1102 = vcmask 1041409
    %v1103 = vsel %vm1102, %v384, %v328
    %vm1104 = vcmask 1042434
    %v1105 = vsel %vm1104, %v440, %v1103
    %vm1106 = vcmask 1043459
    %v1107 = vsel %vm1106, %v496, %v1105
    %vm1108 = vcmask 1044484
    %v1109 = vsel %vm1108, %v552, %v1107
    %vm1110 = vcmask 1045509
    %v1111 = vsel %vm1110, %v608, %v1109
    %vm1112 = vcmask 1046534
    %v1113 = vsel %vm1112, %v664, %v1111
    %vm1114 = vcmask 1047559
    %v1115 = vsel %vm1114, %v720, %v1113
    %v1116 = vsel %vm1102, %v391, %v335
    %v1117 = vsel %vm1104, %v447, %v1116
    %v1118 = vsel %vm1106, %v503, %v1117
    %v1119 = vsel %vm1108, %v559, %v1118
    %v1120 = vsel %vm1110, %v615, %v1119
    %v1121 = vsel %vm1112, %v671, %v1120
    %v1122 = vsel %vm1114, %v727, %v1121
    %v1123 = vsel %vm1102, %v398, %v342
    %v1124 = vsel %vm1104, %v454, %v1123
    %v1125 = vsel %vm1106, %v510, %v1124
    %v1126 = vsel %vm1108, %v566, %v1125
    %v1127 = vsel %vm1110, %v622, %v1126
    %v1128 = vsel %vm1112, %v678, %v1127
    %v1129 = vsel %vm1114, %v734, %v1128
    %v1130 = vsel %vm1102, %v405, %v349
    %v1131 = vsel %vm1104, %v461, %v1130
    %v1132 = vsel %vm1106, %v517, %v1131
    %v1133 = vsel %vm1108, %v573, %v1132
    %v1134 = vsel %vm1110, %v629, %v1133
    %v1135 = vsel %vm1112, %v685, %v1134
    %v1136 = vsel %vm1114, %v741, %v1135
    %v1137 = vsel %vm1102, %v412, %v356
    %v1138 = vsel %vm1104, %v468, %v1137
    %v1139 = vsel %vm1106, %v524, %v1138
    %v1140 = vsel %vm1108, %v580, %v1139
    %v1141 = vsel %vm1110, %v636, %v1140
    %v1142 = vsel %vm1112, %v692, %v1141
    %v1143 = vsel %vm1114, %v748, %v1142
    %v1144 = vsel %vm1102, %v419, %v363
    %v1145 = vsel %vm1104, %v475, %v1144
    %v1146 = vsel %vm1106, %v531, %v1145
    %v1147 = vsel %vm1108, %v587, %v1146
    %v1148 = vsel %vm1110, %v643, %v1147
    %v1149 = vsel %vm1112, %v699, %v1148
    %v1150 = vsel %vm1114, %v755, %v1149
    %v1151 = vsel %vm1102, %v426, %v370
    %v1152 = vsel %vm1104, %v482, %v1151
    %v1153 = vsel %vm1106, %v538, %v1152
    %v1154 = vsel %vm1108, %v594, %v1153
    %v1155 = vsel %vm1110, %v650, %v1154
    %v1156 = vsel %vm1112, %v706, %v1155
    %v1157 = vsel %vm1114, %v762, %v1156
    %v1158 = vsel %vm1102, %v433, %v377
    %v1159 = vsel %vm1104, %v489, %v1158
    %v1160 = vsel %vm1106, %v545, %v1159
    %v1161 = vsel %vm1108, %v601, %v1160
    %v1162 = vsel %vm1110, %v657, %v1161
    %v1163 = vsel %vm1112, %v713, %v1162
    %v1164 = vsel %vm1114, %v769, %v1163
    %1173 = vmatprep.subr.mxu0 %v771
    %1174 = vmatpush1.msra.mxu0 %v770
    %1175 = vmatprep.subr.mxu0 %v773
    %1176 = vmatpush1.msra.mxu0 %v772
    %1177 = vmatprep.subr.mxu0 %v775
    %1178 = vmatpush1.msra.mxu0 %v774
    %1179 = vmatprep.subr.mxu0 %v777
    %1180 = vmatpush1.msra.mxu0 %v776
    %1181 = vmatprep.subr.mxu0 %v779
    %1182 = vmatpush1.msra.mxu0 %v778
    %1183 = vmatprep.subr.mxu0 %v781
    %1184 = vmatpush1.msra.mxu0 %v780
    %1185 = vmatprep.subr.mxu0 %v783
    %1186 = vmatpush1.msra.mxu0 %v782
    %1187 = vmatprep.subr.mxu0 %v785
    %1188 = vmatpush1.msra.mxu0 %v784
    %1189 = vmatprep.subr.mxu0 %v787
    %1190 = vmatpush1.msra.mxu0 %v786
    %1191 = vmatprep.subr.mxu0 %v789
    %1192 = vmatpush1.msra.mxu0 %v788
    %1193 = vmatprep.subr.mxu0 %v791
    %1194 = vmatpush1.msra.mxu0 %v790
    %1195 = vmatprep.subr.mxu0 %v793
    %1196 = vmatpush1.msra.mxu0 %v792
    %1197 = vmatprep.subr.mxu0 %v795
    %1198 = vmatpush1.msra.mxu0 %v794
    %1199 = vmatprep.subr.mxu0 %v797
    %1200 = vmatpush1.msra.mxu0 %v796
    %1201 = vmatprep.subr.mxu0 %v799
    %1202 = vmatpush1.msra.mxu0 %v798
    %1203 = vmatprep.subr.mxu0 %v801
    %1204 = vmatpush1.msra.mxu0 %v800
    %1205 = vmatprep.subr.mxu0 %v803
    %1206 = vmatpush1.msra.mxu0 %v802
    %1207 = vmatprep.subr.mxu0 %v805
    %1208 = vmatpush1.msra.mxu0 %v804
    %1209 = vmatprep.subr.mxu0 %v807
    %1210 = vmatpush1.msra.mxu0 %v806
    %1211 = vmatprep.subr.mxu0 %v809
    %1212 = vmatpush1.msra.mxu0 %v808
    %1213 = vmatprep.subr.mxu0 %v811
    %1214 = vmatpush1.msra.mxu0 %v810
    %1215 = vmatprep.subr.mxu0 %v813
    %1216 = vmatpush1.msra.mxu0 %v812
    %1217 = vmatprep.subr.mxu0 %v815
    %1218 = vmatpush1.msra.mxu0 %v814
    %1219 = vmatprep.subr.mxu0 %v817
    %1220 = vmatpush1.msra.mxu0 %v816
    %1221 = vmatprep.subr.mxu0 %v819
    %1222 = vmatpush1.msra.mxu0 %v818
    %1223 = vmatprep.subr.mxu0 %v821
    %1224 = vmatpush1.msra.mxu0 %v820
    %1225 = vmatprep.subr.mxu0 %v823
    %1226 = vmatpush1.msra.mxu0 %v822
    %1227 = vmatprep.subr.mxu0 %v825
    %1228 = vmatpush1.msra.mxu0 %v824
    %1229 = vmatprep.subr.mxu0 %v827
    %1230 = vmatpush1.msra.mxu0 %v826
    %1231 = vmatprep.subr.mxu0 %v829
    %1232 = vmatpush1.msra.mxu0 %v828
    %1233 = vmatprep.subr.mxu0 %v831
    %1234 = vmatpush1.msra.mxu0 %v830
    %1235 = vmatprep.subr.mxu0 %v833
    %1236 = vmatpush1.msra.mxu0 %v832
    %1237 = vmatprep.mubr.f32.mxu0 %v1122
    %1238 = vmatmul.mubr.f32.gmra.mrb[0].mxu0 %v1115
    %v1239 = vpop.f32.mrb[0].mxu0
    %v1240 = vadd.f32 %v1031, %v1239
    %v1241 = vpop.f32.mrb[0].mxu0
    %v1242 = vadd.f32 %v1035, %v1241
    %1243 = vdwg.mxu0
    %1244 = vmatprep.subr.mxu0 %v835
    %1245 = vmatpush1.msra.mxu0 %v834
    %1246 = vmatprep.subr.mxu0 %v837
    %1247 = vmatpush1.msra.mxu0 %v836
    %1248 = vmatprep.subr.mxu0 %v839
    %1249 = vmatpush1.msra.mxu0 %v838
    %1250 = vmatprep.subr.mxu0 %v841
    %1251 = vmatpush1.msra.mxu0 %v840
    %1252 = vmatprep.subr.mxu0 %v843
    %1253 = vmatpush1.msra.mxu0 %v842
    %1254 = vmatprep.subr.mxu0 %v845
    %1255 = vmatpush1.msra.mxu0 %v844
    %1256 = vmatprep.subr.mxu0 %v847
    %1257 = vmatpush1.msra.mxu0 %v846
    %1258 = vmatprep.subr.mxu0 %v849
    %1259 = vmatpush1.msra.mxu0 %v848
    %1260 = vmatprep.subr.mxu0 %v851
    %1261 = vmatpush1.msra.mxu0 %v850
    %1262 = vmatprep.subr.mxu0 %v853
    %1263 = vmatpush1.msra.mxu0 %v852
    %1264 = vmatprep.subr.mxu0 %v855
    %1265 = vmatpush1.msra.mxu0 %v854
    %1266 = vmatprep.subr.mxu0 %v857
    %1267 = vmatpush1.msra.mxu0 %v856
    %1268 = vmatprep.subr.mxu0 %v859
    %1269 = vmatpush1.msra.mxu0 %v858
    %1270 = vmatprep.subr.mxu0 %v861
    %1271 = vmatpush1.msra.mxu0 %v860
    %1272 = vmatprep.subr.mxu0 %v863
    %1273 = vmatpush1.msra.mxu0 %v862
    %1274 = vmatprep.subr.mxu0 %v865
    %1275 = vmatpush1.msra.mxu0 %v864
    %1276 = vmatprep.subr.mxu0 %v867
    %1277 = vmatpush1.msra.mxu0 %v866
    %1278 = vmatprep.subr.mxu0 %v869
    %1279 = vmatpush1.msra.mxu0 %v868
    %1280 = vmatprep.subr.mxu0 %v871
    %1281 = vmatpush1.msra.mxu0 %v870
    %1282 = vmatprep.subr.mxu0 %v873
    %1283 = vmatpush1.msra.mxu0 %v872
    %1284 = vmatprep.subr.mxu0 %v875
    %1285 = vmatpush1.msra.mxu0 %v874
    %1286 = vmatprep.subr.mxu0 %v877
    %1287 = vmatpush1.msra.mxu0 %v876
    %1288 = vmatprep.subr.mxu0 %v879
    %1289 = vmatpush1.msra.mxu0 %v878
    %1290 = vmatprep.subr.mxu0 %v881
    %1291 = vmatpush1.msra.mxu0 %v880
    %1292 = vmatprep.subr.mxu0 %v883
    %1293 = vmatpush1.msra.mxu0 %v882
    %1294 = vmatprep.subr.mxu0 %v885
    %1295 = vmatpush1.msra.mxu0 %v884
    %1296 = vmatprep.subr.mxu0 %v887
    %1297 = vmatpush1.msra.mxu0 %v886
    %1298 = vmatprep.subr.mxu0 %v889
    %1299 = vmatpush1.msra.mxu0 %v888
    %1300 = vmatprep.subr.mxu0 %v891
    %1301 = vmatpush1.msra.mxu0 %v890
    %1302 = vmatprep.subr.mxu0 %v893
    %1303 = vmatpush1.msra.mxu0 %v892
    %1304 = vmatprep.subr.mxu0 %v895
    %1305 = vmatpush1.msra.mxu0 %v894
    %1306 = vmatprep.subr.mxu0 %v897
    %1307 = vmatpush1.msra.mxu0 %v896
    %1308 = vmatprep.mubr.f32.mxu0 %v1136
    %1309 = vmatmul.mubr.f32.gmra.mrb[0].mxu0 %v1129
    %v1310 = vpop.f32.mrb[0].mxu0
    %v1311 = vadd.f32 %v1240, %v1310
    %v1312 = vpop.f32.mrb[0].mxu0
    %v1313 = vadd.f32 %v1242, %v1312
    %1314 = vdwg.mxu0
    %1315 = vmatprep.subr.mxu0 %v899
    %1316 = vmatpush1.msra.mxu0 %v898
    %1317 = vmatprep.subr.mxu0 %v901
    %1318 = vmatpush1.msra.mxu0 %v900
    %1319 = vmatprep.subr.mxu0 %v903
    %1320 = vmatpush1.msra.mxu0 %v902
    %1321 = vmatprep.subr.mxu0 %v905
    %1322 = vmatpush1.msra.mxu0 %v904
    %1323 = vmatprep.subr.mxu0 %v907
    %1324 = vmatpush1.msra.mxu0 %v906
    %1325 = vmatprep.subr.mxu0 %v909
    %1326 = vmatpush1.msra.mxu0 %v908
    %1327 = vmatprep.subr.mxu0 %v911
    %1328 = vmatpush1.msra.mxu0 %v910
    %1329 = vmatprep.subr.mxu0 %v913
    %1330 = vmatpush1.msra.mxu0 %v912
    %1331 = vmatprep.subr.mxu0 %v915
    %1332 = vmatpush1.msra.mxu0 %v914
    %1333 = vmatprep.subr.mxu0 %v917
    %1334 = vmatpush1.msra.mxu0 %v916
    %1335 = vmatprep.subr.mxu0 %v919
    %1336 = vmatpush1.msra.mxu0 %v918
    %1337 = vmatprep.subr.mxu0 %v921
    %1338 = vmatpush1.msra.mxu0 %v920
    %1339 = vmatprep.subr.mxu0 %v923
    %1340 = vmatpush1.msra.mxu0 %v922
    %1341 = vmatprep.subr.mxu0 %v925
    %1342 = vmatpush1.msra.mxu0 %v924
    %1343 = vmatprep.subr.mxu0 %v927
    %1344 = vmatpush1.msra.mxu0 %v926
    %1345 = vmatprep.subr.mxu0 %v929
    %1346 = vmatpush1.msra.mxu0 %v928
    %1347 = vmatprep.subr.mxu0 %v931
    %1348 = vmatpush1.msra.mxu0 %v930
    %1349 = vmatprep.subr.mxu0 %v933
    %1350 = vmatpush1.msra.mxu0 %v932
    %1351 = vmatprep.subr.mxu0 %v935
    %1352 = vmatpush1.msra.mxu0 %v934
    %1353 = vmatprep.subr.mxu0 %v937
    %1354 = vmatpush1.msra.mxu0 %v936
    %1355 = vmatprep.subr.mxu0 %v939
    %1356 = vmatpush1.msra.mxu0 %v938
    %1357 = vmatprep.subr.mxu0 %v941
    %1358 = vmatpush1.msra.mxu0 %v940
    %1359 = vmatprep.subr.mxu0 %v943
    %1360 = vmatpush1.msra.mxu0 %v942
    %1361 = vmatprep.subr.mxu0 %v945
    %1362 = vmatpush1.msra.mxu0 %v944
    %1363 = vmatprep.subr.mxu0 %v947
    %1364 = vmatpush1.msra.mxu0 %v946
    %1365 = vmatprep.subr.mxu0 %v949
    %1366 = vmatpush1.msra.mxu0 %v948
    %1367 = vmatprep.subr.mxu0 %v951
    %1368 = vmatpush1.msra.mxu0 %v950
    %1369 = vmatprep.subr.mxu0 %v953
    %1370 = vmatpush1.msra.mxu0 %v952
    %1371 = vmatprep.subr.mxu0 %v955
    %1372 = vmatpush1.msra.mxu0 %v954
    %1373 = vmatprep.subr.mxu0 %v957
    %1374 = vmatpush1.msra.mxu0 %v956
    %1375 = vmatprep.subr.mxu0 %v959
    %1376 = vmatpush1.msra.mxu0 %v958
    %1377 = vmatprep.subr.mxu0 %v961
    %1378 = vmatpush1.msra.mxu0 %v960
    %1379 = vmatprep.mubr.f32.mxu0 %v1150
    %1380 = vmatmul.mubr.f32.gmra.mrb[0].mxu0 %v1143
    %v1381 = vpop.f32.mrb[0].mxu0
    %v1382 = vadd.f32 %v1311, %v1381
    %v1383 = vpop.f32.mrb[0].mxu0
    %v1384 = vadd.f32 %v1313, %v1383
    %1385 = vdwg.mxu0
    %1386 = vmatprep.subr.mxu0 %v963
    %1387 = vmatpush1.msra.mxu0 %v962
    %1388 = vmatprep.subr.mxu0 %v965
    %1389 = vmatpush1.msra.mxu0 %v964
    %1390 = vmatprep.subr.mxu0 %v967
    %1391 = vmatpush1.msra.mxu0 %v966
    %1392 = vmatprep.subr.mxu0 %v969
    %1393 = vmatpush1.msra.mxu0 %v968
    %1394 = vmatprep.subr.mxu0 %v971
    %1395 = vmatpush1.msra.mxu0 %v970
    %1396 = vmatprep.subr.mxu0 %v973
    %1397 = vmatpush1.msra.mxu0 %v972
    %1398 = vmatprep.subr.mxu0 %v975
    %1399 = vmatpush1.msra.mxu0 %v974
    %1400 = vmatprep.subr.mxu0 %v977
    %1401 = vmatpush1.msra.mxu0 %v976
    %1402 = vmatprep.subr.mxu0 %v979
    %1403 = vmatpush1.msra.mxu0 %v978
    %1404 = vmatprep.subr.mxu0 %v981
    %1405 = vmatpush1.msra.mxu0 %v980
    %1406 = vmatprep.subr.mxu0 %v983
    %1407 = vmatpush1.msra.mxu0 %v982
    %1408 = vmatprep.subr.mxu0 %v985
    %1409 = vmatpush1.msra.mxu0 %v984
    %1410 = vmatprep.subr.mxu0 %v987
    %1411 = vmatpush1.msra.mxu0 %v986
    %1412 = vmatprep.subr.mxu0 %v989
    %1413 = vmatpush1.msra.mxu0 %v988
    %1414 = vmatprep.subr.mxu0 %v991
    %1415 = vmatpush1.msra.mxu0 %v990
    %1416 = vmatprep.subr.mxu0 %v993
    %1417 = vmatpush1.msra.mxu0 %v992
    %1418 = vmatprep.subr.mxu0 %v995
    %1419 = vmatpush1.msra.mxu0 %v994
    %1420 = vmatprep.subr.mxu0 %v997
    %1421 = vmatpush1.msra.mxu0 %v996
    %1422 = vmatprep.subr.mxu0 %v999
    %1423 = vmatpush1.msra.mxu0 %v998
    %1424 = vmatprep.subr.mxu0 %v1001
    %1425 = vmatpush1.msra.mxu0 %v1000
    %1426 = vmatprep.subr.mxu0 %v1003
    %1427 = vmatpush1.msra.mxu0 %v1002
    %1428 = vmatprep.subr.mxu0 %v1005
    %1429 = vmatpush1.msra.mxu0 %v1004
    %1430 = vmatprep.subr.mxu0 %v1007
    %1431 = vmatpush1.msra.mxu0 %v1006
    %1432 = vmatprep.subr.mxu0 %v1009
    %1433 = vmatpush1.msra.mxu0 %v1008
    %1434 = vmatprep.subr.mxu0 %v1011
    %1435 = vmatpush1.msra.mxu0 %v1010
    %1436 = vmatprep.subr.mxu0 %v1013
    %1437 = vmatpush1.msra.mxu0 %v1012
    %1438 = vmatprep.subr.mxu0 %v1015
    %1439 = vmatpush1.msra.mxu0 %v1014
    %1440 = vmatprep.subr.mxu0 %v1017
    %1441 = vmatpush1.msra.mxu0 %v1016
    %1442 = vmatprep.subr.mxu0 %v1019
    %1443 = vmatpush1.msra.mxu0 %v1018
    %1444 = vmatprep.subr.mxu0 %v1021
    %1445 = vmatpush1.msra.mxu0 %v1020
    %1446 = vmatprep.subr.mxu0 %v1023
    %1447 = vmatpush1.msra.mxu0 %v1022
    %1448 = vmatprep.subr.mxu0 %v1025
    %1449 = vmatpush1.msra.mxu0 %v1024
    %1450 = vmatprep.mubr.f32.mxu0 %v1164
    %1451 = vmatmul.mubr.f32.gmra.mrb[0].mxu0 %v1157
    %v1452 = vpop.f32.mrb[0].mxu0
    %v1453 = vadd.f32 %v1382, %v1452
    %v1454 = vpop.f32.mrb[0].mxu0
    %v1455 = vadd.f32 %v1384, %v1454
    %1456 = vdwg.mxu0
    %v1457 = vmax.f32 %v1453, 0.0
    %v1458 = vmax.f32 %v1455, 0.0
    %1459 = vst [vmem:[#allocation9] sm:$0xff] %v1457
    %1460 = vst [vmem:[#allocation9 + $0x8] sm:$0xff] %v1458
    %v1461 = vld [vmem:[#allocation7] sm:$0xff]
    %v1462 = vld [vmem:[#allocation7 + $0x8] sm:$0xff]
    %v1463 = vld [vmem:[#allocation7 + $0x10] sm:$0xff]
    %v1464 = vld [vmem:[#allocation7 + $0x18] sm:$0xff]
    %v1465 = vld [vmem:[#allocation7 + $0x20] sm:$0xff]
    %v1466 = vld [vmem:[#allocation7 + $0x28] sm:$0xff]
    %v1467 = vld [vmem:[#allocation7 + $0x30] sm:$0xff]
    %v1468 = vld [vmem:[#allocation7 + $0x38] sm:$0xff]
    %v1469 = vld [vmem:[#allocation7 + $0x40] sm:$0xff]
    %v1470 = vld [vmem:[#allocation7 + $0x48] sm:$0xff]
    %v1471 = vld [vmem:[#allocation7 + $0x50] sm:$0xff]
    %v1472 = vld [vmem:[#allocation7 + $0x58] sm:$0xff]
    %v1473 = vld [vmem:[#allocation7 + $0x60] sm:$0xff]
    %v1474 = vld [vmem:[#allocation7 + $0x68] sm:$0xff]
    %v1475 = vld [vmem:[#allocation7 + $0x70] sm:$0xff]
    %v1476 = vld [vmem:[#allocation7 + $0x78] sm:$0xff]
    %v1477 = vld [vmem:[#allocation7 + $0x80] sm:$0xff]
    %v1478 = vld [vmem:[#allocation7 + $0x88] sm:$0xff]
    %v1479 = vld [vmem:[#allocation7 + $0x90] sm:$0xff]
    %v1480 = vld [vmem:[#allocation7 + $0x98] sm:$0xff]
    %v1481 = vld [vmem:[#allocation7 + $0xa0] sm:$0xff]
    %v1482 = vld [vmem:[#allocation7 + $0xa8] sm:$0xff]
    %v1483 = vld [vmem:[#allocation7 + $0xb0] sm:$0xff]
    %v1484 = vld [vmem:[#allocation7 + $0xb8] sm:$0xff]
    %v1485 = vld [vmem:[#allocation7 + $0xc0] sm:$0xff]
    %v1486 = vld [vmem:[#allocation7 + $0xc8] sm:$0xff]
    %v1487 = vld [vmem:[#allocation7 + $0xd0] sm:$0xff]
    %v1488 = vld [vmem:[#allocation7 + $0xd8] sm:$0xff]
    %v1489 = vld [vmem:[#allocation7 + $0xe0] sm:$0xff]
    %v1490 = vld [vmem:[#allocation7 + $0xe8] sm:$0xff]
    %v1491 = vld [vmem:[#allocation7 + $0xf0] sm:$0xff]
    %v1492 = vld [vmem:[#allocation7 + $0xf8] sm:$0xff]
    %v1493 = vld [vmem:[%s4] sm:$0x1]
    %v1495 = vlaneseq
    %v1496 = vshrl.u32 %v1495, 7
    %v1497 = vsub.s32 0, %v1496
    %v1498 = vrot.slane %v1493, %v1497
    %1500 = vmatprep.subr.mxu0 0.0
    %1501 = vmatpush1.msra.mxu0 %v1461
    %1502 = vmatprep.subr.mxu0 0.0
    %1503 = vmatpush1.msra.mxu0 %v1462
    %1504 = vmatprep.subr.mxu0 0.0
    %1505 = vmatpush1.msra.mxu0 %v1463
    %1506 = vmatprep.subr.mxu0 0.0
    %1507 = vmatpush1.msra.mxu0 %v1464
    %1508 = vmatprep.subr.mxu0 0.0
    %1509 = vmatpush1.msra.mxu0 %v1465
    %1510 = vmatprep.subr.mxu0 0.0
    %1511 = vmatpush1.msra.mxu0 %v1466
    %1512 = vmatprep.subr.mxu0 0.0
    %1513 = vmatpush1.msra.mxu0 %v1467
    %1514 = vmatprep.subr.mxu0 0.0
    %1515 = vmatpush1.msra.mxu0 %v1468
    %1516 = vmatprep.subr.mxu0 0.0
    %1517 = vmatpush1.msra.mxu0 %v1469
    %1518 = vmatprep.subr.mxu0 0.0
    %1519 = vmatpush1.msra.mxu0 %v1470
    %1520 = vmatprep.subr.mxu0 0.0
    %1521 = vmatpush1.msra.mxu0 %v1471
    %1522 = vmatprep.subr.mxu0 0.0
    %1523 = vmatpush1.msra.mxu0 %v1472
    %1524 = vmatprep.subr.mxu0 0.0
    %1525 = vmatpush1.msra.mxu0 %v1473
    %1526 = vmatprep.subr.mxu0 0.0
    %1527 = vmatpush1.msra.mxu0 %v1474
    %1528 = vmatprep.subr.mxu0 0.0
    %1529 = vmatpush1.msra.mxu0 %v1475
    %1530 = vmatprep.subr.mxu0 0.0
    %1531 = vmatpush1.msra.mxu0 %v1476
    %1532 = vmatprep.subr.mxu0 0.0
    %1533 = vmatpush1.msra.mxu0 %v1477
    %1534 = vmatprep.subr.mxu0 0.0
    %1535 = vmatpush1.msra.mxu0 %v1478
    %1536 = vmatprep.subr.mxu0 0.0
    %1537 = vmatpush1.msra.mxu0 %v1479
    %1538 = vmatprep.subr.mxu0 0.0
    %1539 = vmatpush1.msra.mxu0 %v1480
    %1540 = vmatprep.subr.mxu0 0.0
    %1541 = vmatpush1.msra.mxu0 %v1481
    %1542 = vmatprep.subr.mxu0 0.0
    %1543 = vmatpush1.msra.mxu0 %v1482
    %1544 = vmatprep.subr.mxu0 0.0
    %1545 = vmatpush1.msra.mxu0 %v1483
    %1546 = vmatprep.subr.mxu0 0.0
    %1547 = vmatpush1.msra.mxu0 %v1484
    %1548 = vmatprep.subr.mxu0 0.0
    %1549 = vmatpush1.msra.mxu0 %v1485
    %1550 = vmatprep.subr.mxu0 0.0
    %1551 = vmatpush1.msra.mxu0 %v1486
    %1552 = vmatprep.subr.mxu0 0.0
    %1553 = vmatpush1.msra.mxu0 %v1487
    %1554 = vmatprep.subr.mxu0 0.0
    %1555 = vmatpush1.msra.mxu0 %v1488
    %1556 = vmatprep.subr.mxu0 0.0
    %1557 = vmatpush1.msra.mxu0 %v1489
    %1558 = vmatprep.subr.mxu0 0.0
    %1559 = vmatpush1.msra.mxu0 %v1490
    %1560 = vmatprep.subr.mxu0 0.0
    %1561 = vmatpush1.msra.mxu0 %v1491
    %1562 = vmatprep.subr.mxu0 0.0
    %1563 = vmatpush1.msra.mxu0 %v1492
    %1564 = vmatprep.mubr.f32.mxu0 %v1458
    %1565 = vmatmul.mubr.f32.gmra.mrb[0].mxu0 %v1457
    %v1566 = vpop.f32.mrb[0].mxu0
    %v1567 = vadd.f32 %v1498, %v1566
    %v1568 = vpop.f32.mrb[0].mxu0
    %1569 = vdwg.mxu0
    %1570 = vst [vmem:[#allocation8] sm:$0xff] %v1567
    // Predicated region
    $region34: #{tpu_custom_call.1} parent=1 // pred_check
      _
    $region35: #{tpu_custom_call.1} parent=1 // pred_check_branch
      %1572 = sbr.rel (0) target = $region37
    $region36: #{tpu_custom_call.1} parent=1 // pred_region
      %s1574 = ssub.s32 128, 128
      %1575 = vsyncadd [#allocation4], %s1574
      %s1577 = sshll.u32 [#allocation8], 4
      %s1578 = int_to_ptr.vmem [resolvable:$true] %s1577
      %1580 = dma.vmem_to_hbm [thread:$0]  %s1578, 128, %s5, [#allocation4]
    $region37: #{tpu_custom_call.1} parent=1 // pred_fallthru
      _
    // Predicated region
    $region38: #{tpu_custom_call.1} parent=1 // pred_check
      _
    $region39: #{tpu_custom_call.1} parent=1 // pred_check_branch
      %1582 = sbr.rel (0) target = $region41
    $region40: #{tpu_custom_call.1} parent=1 // pred_region
      %s1584 = ssub.s32 256, 256
      %1585 = vsyncadd [#allocation10], %s1584
      %s1587 = sshll.u32 [#allocation9], 4
      %s1588 = int_to_ptr.vmem [resolvable:$true] %s1587
      %1590 = dma.vmem_to_hbm [thread:$0]  %s1588, 256, %s6, [#allocation10]
    $region41: #{tpu_custom_call.1} parent=1 // pred_fallthru
      _
    // Predicated region
    $region42: #{tpu_custom_call.1} parent=1 // pred_check
      _
    $region43: #{tpu_custom_call.1} parent=1 // pred_check_branch
      %1592 = sbr.rel (0) target = $region45
    $region44: #{tpu_custom_call.1} parent=1 // pred_region
      %1593 = dma.done [#allocation4], 128
    $region45: #{tpu_custom_call.1} parent=1 // pred_fallthru
      _
    // Predicated region
    $region46: #{tpu_custom_call.1} parent=1 // pred_check
      _
    $region47: #{tpu_custom_call.1} parent=1 // pred_check_branch
      %1595 = sbr.rel (0) target = $region49
    $region48: #{tpu_custom_call.1} parent=1 // pred_region
      %1596 = dma.done [#allocation10], 256
    $region49: #{tpu_custom_call.1} parent=1 // pred_fallthru
      _
    %1597 = vsyncpa [#allocation3], 1
    %1598 = vsyncpa [#allocation6], 1
    %1599 = vsyncpa [#allocation4], 1
    %1600 = vsyncpa [#allocation10], 1

</llo_original>
